<compile_context>
chip_gen: v6e
topology: v6e:2x2x1
jax: 0.10.0
libtpu: 0.0.40
codegen_flags: <defaults>
</compile_context>

<pallas_src>
import functools

import jax
import jax.numpy as jnp
import numpy as np
from jax.experimental import pallas as pl
from jax.experimental.pallas import tpu as pltpu

NLANE = 128  # every kernel operand's minor dim is zero-padded to this


# ---------------------------------------------------------------------------
# Pallas kernels
# ---------------------------------------------------------------------------
def _conv_stages_kernel(cs_ref, w1c_ref, b1c_ref, w2c_ref, b2c_ref,
                        o1_ref, o2_ref, *, h1, w1sp, c1):
    """Fused conv1(+ReLU+pool) -> conv2(+ReLU+pool-max) in one kernel.

    cs_ref : (4*nrow, 128) bf16  conv1 im2col patches, 4 pool positions
             stacked along rows; within each block rows are (b, i, j) over the
             POOLED conv1 grid (h1 x w1sp).
    w1c_ref: (128, 128) bf16     conv1 weight, K=(dh,dw,ci) zero-padded.
    w2c_ref: (128, 128) bf16     conv2 weight, K=(dh,dw,ci) zero-padded.
    b*_ref : (1, 128)   f32
    o1_ref : (nrow, 128) bf16    conv1 pooled+ReLU activation (rows (b,i,j)).
    o2_ref : (nrow, 128) bf16    conv2 ReLU, 2x2-pool-max taken at every row;
                                 rows with even (i, j) hold the pooled values.
    """
    nrow = o1_ref.shape[0]

    # ---- stage 1: conv1 as ONE stacked matmul over the 4 pool positions ----
    y = jnp.dot(cs_ref[...], w1c_ref[...], preferred_element_type=jnp.float32)
    p = jnp.maximum(jnp.maximum(y[0 * nrow:1 * nrow], y[1 * nrow:2 * nrow]),
                    jnp.maximum(y[2 * nrow:3 * nrow], y[3 * nrow:4 * nrow]))
    # bias + ReLU once, hoisted past the pool max (max is over raw dots).
    a1 = jnp.maximum(p + b1c_ref[...], 0.0)
    o1_ref[...] = a1.astype(o1_ref.dtype)

    # ---- stage 2: conv2, im2col built in-kernel from a1 -------------------
    # row r = b*h1*w1sp + i*w1sp + j ; lanes [0:c1] hold conv1 channels,
    # lanes >= c1 are exactly zero (zero-padded weights + zero-padded bias).
    ridx = jax.lax.broadcasted_iota(jnp.int32, (nrow, NLANE), 0)
    jshift = w1sp.bit_length() - 1          # w1sp, h1 are powers of two
    jj = jnp.bitwise_and(ridx, w1sp - 1)
    ii = jnp.bitwise_and(jnp.right_shift(ridx, jshift), h1 - 1)

    cols2 = None
    for dh in range(3):
        for dw in range(3):
            di, dj = dh - 1, dw - 1
            off = di * w1sp + dj
            s = a1 if off == 0 else pltpu.roll(a1, shift=(-off) % nrow, axis=0)
            # zero rows whose source pixel is outside the (h1, w1sp) map
            conds = []
            if di < 0:
                conds.append(ii >= -di)
            if di > 0:
                conds.append(ii < h1 - di)
            if dj < 0:
                conds.append(jj >= -dj)
            if dj > 0:
                conds.append(jj < w1sp - dj)
            if conds:
                v = conds[0]
                for c in conds[1:]:
                    v = jnp.logical_and(v, c)
                s = jnp.where(v, s, 0.0)
            # place this window position at its K-slot along lanes
            k_off = (dh * 3 + dw) * c1
            if k_off:
                s = pltpu.roll(s, shift=k_off, axis=1)
            cols2 = s if cols2 is None else cols2 + s

    y2 = jnp.dot(cols2.astype(jnp.bfloat16), w2c_ref[...],
                 preferred_element_type=jnp.float32)
    y2 = jnp.maximum(y2 + b2c_ref[...], 0.0)          # bias + ReLU once

    # 2x2 max-pool via sublane rolls; valid at rows with even (i, j),
    # which the (XLA-side) strided slice selects after the kernel.
    t = jnp.maximum(y2, pltpu.roll(y2, shift=nrow - 1, axis=0))
    o2 = jnp.maximum(t, pltpu.roll(t, shift=nrow - w1sp, axis=0))
    o2_ref[...] = o2.astype(o2_ref.dtype)


def _fc_fused_kernel(x_ref, w1_ref, b1_ref, w2_ref, b2_ref, *o_refs):
    """fc1 and fc2 in one kernel; the fc1 result never leaves VMEM/vregs.

    o_refs is (o1, o2) when fc1 is extracted, else just (o2,).
    Note: no activation between fc1 and fc2 (matches the wrapped submodule).
    """
    h = jnp.dot(x_ref[...], w1_ref[...],
                preferred_element_type=jnp.float32) + b1_ref[...]
    y = jnp.dot(h.astype(jnp.bfloat16), w2_ref[...],
                preferred_element_type=jnp.float32) + b2_ref[...]
    if len(o_refs) == 2:
        o_refs[0][...] = h
    o_refs[-1][...] = y


# ---------------------------------------------------------------------------
# pallas_call wrappers
# ---------------------------------------------------------------------------
def conv_stages(cs, w1c, b1c, w2c, b2c, *, batch, h1, w1sp, c1):
    """Fused conv1+conv2 stage.  Returns (conv1_act, conv2_poolmax), both
    (batch*h1*w1sp, 128) bf16."""
    nrow = batch * h1 * w1sp
    assert cs.shape == (4 * nrow, NLANE)
    assert nrow % 8 == 0
    assert h1 & (h1 - 1) == 0 and w1sp & (w1sp - 1) == 0, "pooled H/W must be pow2"
    assert 9 * c1 <= NLANE
    kern = functools.partial(_conv_stages_kernel, h1=h1, w1sp=w1sp, c1=c1)
    return pl.pallas_call(
        kern,
        out_shape=(jax.ShapeDtypeStruct((nrow, NLANE), jnp.bfloat16),
                   jax.ShapeDtypeStruct((nrow, NLANE), jnp.bfloat16)),
        grid=(1,),
        in_specs=[pl.BlockSpec((4 * nrow, NLANE), lambda i: (0, 0)),
                  pl.BlockSpec((NLANE, NLANE), lambda i: (0, 0)),
                  pl.BlockSpec((1, NLANE), lambda i: (0, 0)),
                  pl.BlockSpec((NLANE, NLANE), lambda i: (0, 0)),
                  pl.BlockSpec((1, NLANE), lambda i: (0, 0))],
        out_specs=(pl.BlockSpec((nrow, NLANE), lambda i: (0, 0)),
                   pl.BlockSpec((nrow, NLANE), lambda i: (0, 0))),
    )(cs, w1c, b1c, w2c, b2c)


def fc1_fc2(x, w1, b1, w2, b2, *, emit_fc1):
    """x: (M, K1) bf16, M multiple of 8.  Returns a tuple of (M,128) f32
    outputs: (fc1, fc2) when emit_fc1 else (fc2,)."""
    m, k1 = x.shape
    assert m % 8 == 0 and k1 % NLANE == 0
    o_shapes, o_specs = [], []
    if emit_fc1:
        o_shapes.append(jax.ShapeDtypeStruct((m, NLANE), jnp.float32))
        o_specs.append(pl.BlockSpec((m, NLANE), lambda i: (0, 0)))
    o_shapes.append(jax.ShapeDtypeStruct((m, NLANE), jnp.float32))
    o_specs.append(pl.BlockSpec((m, NLANE), lambda i: (0, 0)))
    res = pl.pallas_call(
        _fc_fused_kernel,
        out_shape=tuple(o_shapes),
        grid=(1,),
        in_specs=[pl.BlockSpec((m, k1), lambda i: (0, 0)),
                  pl.BlockSpec((k1, NLANE), lambda i: (0, 0)),
                  pl.BlockSpec((1, NLANE), lambda i: (0, 0)),
                  pl.BlockSpec((NLANE, NLANE), lambda i: (0, 0)),
                  pl.BlockSpec((1, NLANE), lambda i: (0, 0))],
        out_specs=tuple(o_specs),
    )(x, w1, b1, w2, b2)
    if not isinstance(res, (tuple, list)):
        res = (res,)
    return tuple(res)


# ---------------------------------------------------------------------------
# XLA-side layout glue (runs inside the single jit, fuses into kernel feeds)
# ---------------------------------------------------------------------------
def _im2col_pool_stacked(x_nhwc):
    """3x3/pad=1 patches of the raw input, the 4 positions of each 2x2 pool
    window stacked along rows -> (4*B*(H//2)*(W//2), 128) bf16, zero-padded
    lane-dense.  Within each position block rows are ordered (b, i, j)."""
    B, H, W, C = x_nhwc.shape
    K = 9 * C
    assert K <= NLANE and H % 2 == 0 and W % 2 == 0
    xp = jnp.pad(x_nhwc, ((0, 0), (1, 1), (1, 1), (0, 0)))
    cols = jnp.concatenate(
        [xp[:, dh:dh + H, dw:dw + W, :] for dh in range(3) for dw in range(3)],
        axis=-1)                                               # (B, H, W, 9C)
    cols = jnp.pad(cols, ((0, 0), (0, 0), (0, 0), (0, NLANE - K)))
    cols = cols.reshape(B, H // 2, 2, W // 2, 2, NLANE)
    stacked = jnp.transpose(cols, (2, 4, 0, 1, 3, 5))          # (2,2,B,H/2,W/2,128)
    mo = B * (H // 2) * (W // 2)
    return stacked.reshape(4 * mo, NLANE).astype(jnp.bfloat16)


def _conv_params(w_oihw, b):
    """(Cout,Cin,3,3) torch weight -> lane-padded (128,128) bf16 + (1,128) f32."""
    cout, cin, kh, kw = w_oihw.shape
    k = kh * kw * cin
    wmat = jnp.transpose(w_oihw, (2, 3, 1, 0)).reshape(k, cout)   # K=(dh,dw,ci)
    wmat = jnp.pad(wmat, ((0, NLANE - k), (0, NLANE - cout))).astype(jnp.bfloat16)
    bias = jnp.pad(b, (0, NLANE - cout)).reshape(1, NLANE).astype(jnp.float32)
    return wmat, bias


def _fc_params(w_in_out, b):
    """(Kin,Nout) weight -> (Kpad, 128) bf16 + (1, 128) f32 (zero-padded)."""
    kin, nout = w_in_out.shape
    kpad = max(NLANE, ((kin + NLANE - 1) // NLANE) * NLANE)
    w = jnp.pad(w_in_out, ((0, kpad - kin), (0, NLANE - nout))).astype(jnp.bfloat16)
    bias = jnp.pad(b, (0, NLANE - nout)).reshape(1, NLANE).astype(jnp.float32)
    return w, bias


# ---------------------------------------------------------------------------
# Synthetic CNN submodule parameters + FeatureExtractor
# ---------------------------------------------------------------------------
def init_params(key):
    ks = jax.random.split(key, 8)
    p = {}
    p["conv1_w"] = 0.1 * jax.random.normal(ks[0], (8, 4, 3, 3), jnp.float32)
    p["conv1_b"] = 0.1 * jax.random.normal(ks[1], (8,), jnp.float32)
    p["conv2_w"] = 0.1 * jax.random.normal(ks[2], (16, 8, 3, 3), jnp.float32)
    p["conv2_b"] = 0.1 * jax.random.normal(ks[3], (16,), jnp.float32)
    p["fc1_w"] = 0.05 * jax.random.normal(ks[4], (256, 32), jnp.float32)
    p["fc1_b"] = 0.05 * jax.random.normal(ks[5], (32,), jnp.float32)
    p["fc2_w"] = 0.05 * jax.random.normal(ks[6], (32, 10), jnp.float32)
    p["fc2_b"] = 0.05 * jax.random.normal(ks[7], (10,), jnp.float32)
    return p


class FeatureExtractor:
    """JAX/Pallas port of the PyTorch FeatureExtractor wrapper."""

    def __init__(self, params, extracted_layers):
        self.extracted_layers = list(extracted_layers)
        # lane-padded bf16 parameters, prepared once (outside the hot path)
        self._c1w, self._c1b = _conv_params(params["conv1_w"], params["conv1_b"])
        self._c2w, self._c2b = _conv_params(params["conv2_w"], params["conv2_b"])
        self._f1w, self._f1b = _fc_params(params["fc1_w"], params["fc1_b"])
        self._f2w, self._f2b = _fc_params(params["fc2_w"], params["fc2_b"])
        self._nc1 = int(params["conv1_b"].shape[0])
        self._nc2 = int(params["conv2_b"].shape[0])
        self._nf1 = int(params["fc1_b"].shape[0])
        self._nf2 = int(params["fc2_b"].shape[0])
        # the whole per-call compute is one jitted graph
        self._fwd = jax.jit(self._forward_impl)

    def _forward_impl(self, x_nchw):
        ext = self.extracted_layers
        outputs = []
        B, _, H, W = x_nchw.shape
        H1, W1 = H // 2, W // 2
        x = jnp.transpose(x_nchw, (0, 2, 3, 1)).astype(jnp.float32)   # NHWC

        # ---- conv1 + conv2 (+bias+ReLU+pool each): ONE pallas_call ----
        cs = _im2col_pool_stacked(x)
        o1, o2 = conv_stages(cs, self._c1w, self._c1b, self._c2w, self._c2b,
                             batch=B, h1=H1, w1sp=W1, c1=self._nc1)

        if "conv1" in ext:
            c1_nhwc = o1.reshape(B, H1, W1, NLANE)[..., :self._nc1]
            outputs.append(jnp.transpose(c1_nhwc, (0, 3, 1, 2)).astype(jnp.float32))

        # pooled conv2 rows live at even (i, j): strided slice + channel crop
        c2_nhwc = o2.reshape(B, H1, W1, NLANE)[:, ::2, ::2, :self._nc2]
        c2_nchw = jnp.transpose(c2_nhwc, (0, 3, 1, 2)).astype(jnp.float32)
        if "conv2" in ext:
            outputs.append(c2_nchw)

        # ---- flatten exactly like torch x.view(B, -1) on NCHW ----
        xf = c2_nchw.reshape(B, -1).astype(jnp.bfloat16)
        k = xf.shape[1]
        kpad = self._f1w.shape[0]
        mpad = ((B + 7) // 8) * 8              # full (8,128) unmasked fc stores
        xf = jnp.pad(xf, ((0, mpad - B), (0, kpad - k)))

        # ---- fc1 + fc2 fused into one pallas_call ----
        fc_out = fc1_fc2(xf, self._f1w, self._f1b, self._f2w, self._f2b,
                         emit_fc1=("fc1" in ext))
        if "fc1" in ext:
            outputs.append(fc_out[0][:B, :self._nf1])
        if "fc2" in ext:
            outputs.append(fc_out[-1][:B, :self._nf2])
        return tuple(outputs)

    def forward(self, x_nchw):
        outs = self._fwd(x_nchw)
        outs = jax.block_until_ready(outs)
        # single host transfer, mirroring `.data.numpy()` once per layer
        return [np.asarray(o) for o in jax.device_get(outs)]


# ---------------------------------------------------------------------------
# Pure-JAX f32 reference (for a bf16-tolerance numerical check)
# ---------------------------------------------------------------------------
def _reference_forward(params, x_nchw, extracted):
    def conv_block(x, w, b):
        y = jax.lax.conv_general_dilated(
            x, w, (1, 1), ((1, 1), (1, 1)),
            dimension_numbers=("NCHW", "OIHW", "NCHW"))
        y = jax.nn.relu(y + b[None, :, None, None])
        B, C, H, W = y.shape
        return y.reshape(B, C, H // 2, 2, W // 2, 2).max(axis=(3, 5))

    outs = []
    x = conv_block(x_nchw, params["conv1_w"], params["conv1_b"])
    if "conv1" in extracted:
        outs.append(x)
    x = conv_block(x, params["conv2_w"], params["conv2_b"])
    if "conv2" in extracted:
        outs.append(x)
    x = x.reshape(x.shape[0], -1)
    x = x @ params["fc1_w"] + params["fc1_b"]
    if "fc1" in extracted:
        outs.append(x)
    x = x @ params["fc2_w"] + params["fc2_b"]
    if "fc2" in extracted:
        outs.append(x)
    return outs


# ---------------------------------------------------------------------------
if __name__ == "__main__":
    key = jax.random.PRNGKey(0)
    pkey, xkey = jax.random.split(key)
    params = init_params(pkey)

    # input: NCHW, batch=2, channels=4, spatial=16x16
    x = jax.random.normal(xkey, (2, 4, 16, 16), jnp.float32)

    layers = ["conv1", "conv2", "fc1"]
    extractor = FeatureExtractor(params, extracted_layers=layers)
    feats = extractor.forward(x)
    jax.block_until_ready(jnp.asarray(feats[-1]))

    expected_shapes = [(2, 8, 8, 8), (2, 16, 4, 4), (2, 32)]
    assert [f.shape for f in feats] == expected_shapes, [f.shape for f in feats]
    assert all(np.isfinite(f).all() for f in feats)

    # numerical check vs. f32 reference (generous tolerance for bf16 operands)
    refs = _reference_forward(params, x, layers)
    for got, want in zip(feats, refs):
        np.testing.assert_allclose(got, np.asarray(want), rtol=5e-2, atol=5e-2)

    print("KERNEL_OK")
</pallas_src>

<mosaic_0001>
module attributes {stable_mosaic.version = 11 : i64} {
  func.func @_conv_stages_kernel(%arg0: i32, %arg1: memref<512x128xbf16, #tpu.memory_space<vmem>>, %arg2: memref<128x128xbf16, #tpu.memory_space<vmem>>, %arg3: memref<1x128xf32, #tpu.memory_space<vmem>>, %arg4: memref<128x128xbf16, #tpu.memory_space<vmem>>, %arg5: memref<1x128xf32, #tpu.memory_space<vmem>>, %arg6: memref<128x128xbf16, #tpu.memory_space<vmem>>, %arg7: memref<128x128xbf16, #tpu.memory_space<vmem>>) attributes {dimension_semantics = [#tpu.dimension_semantics<arbitrary>], iteration_bounds = array<i64: 1>, scalar_prefetch = 0 : i64, scratch_operands = 0 : i64, tpu.core_type = #tpu.core_type<tc>, window_params = [{pipeline_mode = #tpu.pipeline_mode<synchronous>, transform_indices = @transform_0, window_bounds = array<i64: 512, 128>}, {pipeline_mode = #tpu.pipeline_mode<synchronous>, transform_indices = @transform_1, window_bounds = array<i64: 128, 128>}, {pipeline_mode = #tpu.pipeline_mode<synchronous>, transform_indices = @transform_2, window_bounds = array<i64: 1, 128>}, {pipeline_mode = #tpu.pipeline_mode<synchronous>, transform_indices = @transform_3, window_bounds = array<i64: 128, 128>}, {pipeline_mode = #tpu.pipeline_mode<synchronous>, transform_indices = @transform_4, window_bounds = array<i64: 1, 128>}, {pipeline_mode = #tpu.pipeline_mode<synchronous>, transform_indices = @transform_5, window_bounds = array<i64: 128, 128>}, {pipeline_mode = #tpu.pipeline_mode<synchronous>, transform_indices = @transform_6, window_bounds = array<i64: 128, 128>}]} {
    %c0 = arith.constant 0 : index
    %c0_0 = arith.constant 0 : index
    %0 = vector.load %arg1[%c0, %c0_0] : memref<512x128xbf16, #tpu.memory_space<vmem>>, vector<512x128xbf16>
    %c0_1 = arith.constant 0 : index
    %c0_2 = arith.constant 0 : index
    %1 = vector.load %arg2[%c0_1, %c0_2] : memref<128x128xbf16, #tpu.memory_space<vmem>>, vector<128x128xbf16>
    %cst = arith.constant dense<0.000000e+00> : vector<512x128xf32>
    %2 = tpu.matmul %0, %1, %cst {dimension_numbers = #tpu.dot_dimension_numbers<[1], [0], [0], [1], [0, 0, 1, 1], [], []>} : vector<512x128xbf16>, vector<128x128xbf16>, vector<512x128xf32> -> vector<512x128xf32>
    %3 = vector.extract_strided_slice %2 {offsets = [0, 0], sizes = [128, 128], strides = [1, 1]} : vector<512x128xf32> to vector<128x128xf32>
    %4 = vector.extract_strided_slice %2 {offsets = [128, 0], sizes = [128, 128], strides = [1, 1]} : vector<512x128xf32> to vector<128x128xf32>
    %5 = arith.maximumf %3, %4 : vector<128x128xf32>
    %6 = vector.extract_strided_slice %2 {offsets = [256, 0], sizes = [128, 128], strides = [1, 1]} : vector<512x128xf32> to vector<128x128xf32>
    %7 = vector.extract_strided_slice %2 {offsets = [384, 0], sizes = [128, 128], strides = [1, 1]} : vector<512x128xf32> to vector<128x128xf32>
    %8 = arith.maximumf %6, %7 : vector<128x128xf32>
    %9 = arith.maximumf %5, %8 : vector<128x128xf32>
    %c0_3 = arith.constant 0 : index
    %c0_4 = arith.constant 0 : index
    %10 = vector.load %arg3[%c0_3, %c0_4] : memref<1x128xf32, #tpu.memory_space<vmem>>, vector<1x128xf32>
    %11 = vector.broadcast %10 : vector<1x128xf32> to vector<128x128xf32>
    %12 = arith.addf %9, %11 : vector<128x128xf32>
    %cst_5 = arith.constant 0.000000e+00 : f32
    %13 = vector.broadcast %cst_5 : f32 to vector<128x128xf32>
    %14 = arith.maximumf %12, %13 : vector<128x128xf32>
    %15 = arith.truncf %14 : vector<128x128xf32> to vector<128x128xbf16>
    %c0_6 = arith.constant 0 : index
    %c0_7 = arith.constant 0 : index
    %16 = vector.load %arg6[%c0_6, %c0_7] : memref<128x128xbf16, #tpu.memory_space<vmem>>, vector<128x128xbf16>
    tpu.vector_store %arg6[%c0_6, %c0_7], %15 {strides = array<i32>} : memref<128x128xbf16, #tpu.memory_space<vmem>>, vector<128x128xbf16>,
    %17 = tpu.iota {dimensions = array<i32: 0>} : vector<128x128xi32>
    %c7_i32 = arith.constant 7 : i32
    %18 = vector.broadcast %c7_i32 : i32 to vector<128x128xi32>
    %19 = arith.andi %17, %18 : vector<128x128xi32>
    %c3_i32 = arith.constant 3 : i32
    %20 = vector.broadcast %c3_i32 : i32 to vector<128x128xi32>
    %21 = arith.shrsi %17, %20 : vector<128x128xi32>
    %c7_i32_8 = arith.constant 7 : i32
    %22 = vector.broadcast %c7_i32_8 : i32 to vector<128x128xi32>
    %23 = arith.andi %21, %22 : vector<128x128xi32>
    %c9_i32 = arith.constant 9 : i32
    %24 = tpu.dynamic_rotate %14 by %c9_i32 dim 0 : vector<128x128xf32>, i32 -> vector<128x128xf32>
    %c1_i32 = arith.constant 1 : i32
    %25 = vector.broadcast %c1_i32 : i32 to vector<128x128xi32>
    %26 = arith.cmpi sge, %23, %25 : vector<128x128xi32>
    %c1_i32_9 = arith.constant 1 : i32
    %27 = vector.broadcast %c1_i32_9 : i32 to vector<128x128xi32>
    %28 = arith.cmpi sge, %19, %27 : vector<128x128xi32>
    %29 = arith.andi %26, %28 : vector<128x128xi1>
    %cst_10 = arith.constant 0.000000e+00 : f32
    %30 = vector.broadcast %cst_10 : f32 to vector<128x128xf32>
    %31 = arith.select %29, %24, %30 : vector<128x128xi1>, vector<128x128xf32>
    %c8_i32 = arith.constant 8 : i32
    %32 = tpu.dynamic_rotate %14 by %c8_i32 dim 0 : vector<128x128xf32>, i32 -> vector<128x128xf32>
    %c1_i32_11 = arith.constant 1 : i32
    %33 = vector.broadcast %c1_i32_11 : i32 to vector<128x128xi32>
    %34 = arith.cmpi sge, %23, %33 : vector<128x128xi32>
    %cst_12 = arith.constant 0.000000e+00 : f32
    %35 = vector.broadcast %cst_12 : f32 to vector<128x128xf32>
    %36 = arith.select %34, %32, %35 : vector<128x128xi1>, vector<128x128xf32>
    %c8_i32_13 = arith.constant 8 : i32
    %37 = tpu.dynamic_rotate %36 by %c8_i32_13 dim 1 : vector<128x128xf32>, i32 -> vector<128x128xf32>
    %38 = arith.addf %31, %37 : vector<128x128xf32>
    %c7_i32_14 = arith.constant 7 : i32
    %39 = tpu.dynamic_rotate %14 by %c7_i32_14 dim 0 : vector<128x128xf32>, i32 -> vector<128x128xf32>
    %c1_i32_15 = arith.constant 1 : i32
    %40 = vector.broadcast %c1_i32_15 : i32 to vector<128x128xi32>
    %41 = arith.cmpi sge, %23, %40 : vector<128x128xi32>
    %c7_i32_16 = arith.constant 7 : i32
    %42 = vector.broadcast %c7_i32_16 : i32 to vector<128x128xi32>
    %43 = arith.cmpi slt, %19, %42 : vector<128x128xi32>
    %44 = arith.andi %41, %43 : vector<128x128xi1>
    %cst_17 = arith.constant 0.000000e+00 : f32
    %45 = vector.broadcast %cst_17 : f32 to vector<128x128xf32>
    %46 = arith.select %44, %39, %45 : vector<128x128xi1>, vector<128x128xf32>
    %c16_i32 = arith.constant 16 : i32
    %47 = tpu.dynamic_rotate %46 by %c16_i32 dim 1 : vector<128x128xf32>, i32 -> vector<128x128xf32>
    %48 = arith.addf %38, %47 : vector<128x128xf32>
    %c1_i32_18 = arith.constant 1 : i32
    %49 = tpu.dynamic_rotate %14 by %c1_i32_18 dim 0 : vector<128x128xf32>, i32 -> vector<128x128xf32>
    %c1_i32_19 = arith.constant 1 : i32
    %50 = vector.broadcast %c1_i32_19 : i32 to vector<128x128xi32>
    %51 = arith.cmpi sge, %19, %50 : vector<128x128xi32>
    %cst_20 = arith.constant 0.000000e+00 : f32
    %52 = vector.broadcast %cst_20 : f32 to vector<128x128xf32>
    %53 = arith.select %51, %49, %52 : vector<128x128xi1>, vector<128x128xf32>
    %c24_i32 = arith.constant 24 : i32
    %54 = tpu.dynamic_rotate %53 by %c24_i32 dim 1 : vector<128x128xf32>, i32 -> vector<128x128xf32>
    %55 = arith.addf %48, %54 : vector<128x128xf32>
    %c32_i32 = arith.constant 32 : i32
    %56 = tpu.dynamic_rotate %14 by %c32_i32 dim 1 : vector<128x128xf32>, i32 -> vector<128x128xf32>
    %57 = arith.addf %55, %56 : vector<128x128xf32>
    %c127_i32 = arith.constant 127 : i32
    %58 = tpu.dynamic_rotate %14 by %c127_i32 dim 0 : vector<128x128xf32>, i32 -> vector<128x128xf32>
    %c7_i32_21 = arith.constant 7 : i32
    %59 = vector.broadcast %c7_i32_21 : i32 to vector<128x128xi32>
    %60 = arith.cmpi slt, %19, %59 : vector<128x128xi32>
    %cst_22 = arith.constant 0.000000e+00 : f32
    %61 = vector.broadcast %cst_22 : f32 to vector<128x128xf32>
    %62 = arith.select %60, %58, %61 : vector<128x128xi1>, vector<128x128xf32>
    %c40_i32 = arith.constant 40 : i32
    %63 = tpu.dynamic_rotate %62 by %c40_i32 dim 1 : vector<128x128xf32>, i32 -> vector<128x128xf32>
    %64 = arith.addf %57, %63 : vector<128x128xf32>
    %c121_i32 = arith.constant 121 : i32
    %65 = tpu.dynamic_rotate %14 by %c121_i32 dim 0 : vector<128x128xf32>, i32 -> vector<128x128xf32>
    %c7_i32_23 = arith.constant 7 : i32
    %66 = vector.broadcast %c7_i32_23 : i32 to vector<128x128xi32>
    %67 = arith.cmpi slt, %23, %66 : vector<128x128xi32>
    %c1_i32_24 = arith.constant 1 : i32
    %68 = vector.broadcast %c1_i32_24 : i32 to vector<128x128xi32>
    %69 = arith.cmpi sge, %19, %68 : vector<128x128xi32>
    %70 = arith.andi %67, %69 : vector<128x128xi1>
    %cst_25 = arith.constant 0.000000e+00 : f32
    %71 = vector.broadcast %cst_25 : f32 to vector<128x128xf32>
    %72 = arith.select %70, %65, %71 : vector<128x128xi1>, vector<128x128xf32>
    %c48_i32 = arith.constant 48 : i32
    %73 = tpu.dynamic_rotate %72 by %c48_i32 dim 1 : vector<128x128xf32>, i32 -> vector<128x128xf32>
    %74 = arith.addf %64, %73 : vector<128x128xf32>
    %c120_i32 = arith.constant 120 : i32
    %75 = tpu.dynamic_rotate %14 by %c120_i32 dim 0 : vector<128x128xf32>, i32 -> vector<128x128xf32>
    %c7_i32_26 = arith.constant 7 : i32
    %76 = vector.broadcast %c7_i32_26 : i32 to vector<128x128xi32>
    %77 = arith.cmpi slt, %23, %76 : vector<128x128xi32>
    %cst_27 = arith.constant 0.000000e+00 : f32
    %78 = vector.broadcast %cst_27 : f32 to vector<128x128xf32>
    %79 = arith.select %77, %75, %78 : vector<128x128xi1>, vector<128x128xf32>
    %c56_i32 = arith.constant 56 : i32
    %80 = tpu.dynamic_rotate %79 by %c56_i32 dim 1 : vector<128x128xf32>, i32 -> vector<128x128xf32>
    %81 = arith.addf %74, %80 : vector<128x128xf32>
    %c119_i32 = arith.constant 119 : i32
    %82 = tpu.dynamic_rotate %14 by %c119_i32 dim 0 : vector<128x128xf32>, i32 -> vector<128x128xf32>
    %c7_i32_28 = arith.constant 7 : i32
    %83 = vector.broadcast %c7_i32_28 : i32 to vector<128x128xi32>
    %84 = arith.cmpi slt, %23, %83 : vector<128x128xi32>
    %c7_i32_29 = arith.constant 7 : i32
    %85 = vector.broadcast %c7_i32_29 : i32 to vector<128x128xi32>
    %86 = arith.cmpi slt, %19, %85 : vector<128x128xi32>
    %87 = arith.andi %84, %86 : vector<128x128xi1>
    %cst_30 = arith.constant 0.000000e+00 : f32
    %88 = vector.broadcast %cst_30 : f32 to vector<128x128xf32>
    %89 = arith.select %87, %82, %88 : vector<128x128xi1>, vector<128x128xf32>
    %c64_i32 = arith.constant 64 : i32
    %90 = tpu.dynamic_rotate %89 by %c64_i32 dim 1 : vector<128x128xf32>, i32 -> vector<128x128xf32>
    %91 = arith.addf %81, %90 : vector<128x128xf32>
    %92 = arith.truncf %91 : vector<128x128xf32> to vector<128x128xbf16>
    %c0_31 = arith.constant 0 : index
    %c0_32 = arith.constant 0 : index
    %93 = vector.load %arg4[%c0_31, %c0_32] : memref<128x128xbf16, #tpu.memory_space<vmem>>, vector<128x128xbf16>
    %cst_33 = arith.constant dense<0.000000e+00> : vector<128x128xf32>
    %94 = tpu.matmul %92, %93, %cst_33 {dimension_numbers = #tpu.dot_dimension_numbers<[1], [0], [0], [1], [0, 0, 1, 1], [], []>} : vector<128x128xbf16>, vector<128x128xbf16>, vector<128x128xf32> -> vector<128x128xf32>
    %c0_34 = arith.constant 0 : index
    %c0_35 = arith.constant 0 : index
    %95 = vector.load %arg5[%c0_34, %c0_35] : memref<1x128xf32, #tpu.memory_space<vmem>>, vector<1x128xf32>
    %96 = vector.broadcast %95 : vector<1x128xf32> to vector<128x128xf32>
    %97 = arith.addf %94, %96 : vector<128x128xf32>
    %cst_36 = arith.constant 0.000000e+00 : f32
    %98 = vector.broadcast %cst_36 : f32 to vector<128x128xf32>
    %99 = arith.maximumf %97, %98 : vector<128x128xf32>
    %c127_i32_37 = arith.constant 127 : i32
    %100 = tpu.dynamic_rotate %99 by %c127_i32_37 dim 0 : vector<128x128xf32>, i32 -> vector<128x128xf32>
    %101 = arith.maximumf %99, %100 : vector<128x128xf32>
    %c120_i32_38 = arith.constant 120 : i32
    %102 = tpu.dynamic_rotate %101 by %c120_i32_38 dim 0 : vector<128x128xf32>, i32 -> vector<128x128xf32>
    %103 = arith.maximumf %101, %102 : vector<128x128xf32>
    %104 = arith.truncf %103 : vector<128x128xf32> to vector<128x128xbf16>
    %c0_39 = arith.constant 0 : index
    %c0_40 = arith.constant 0 : index
    %105 = vector.load %arg7[%c0_39, %c0_40] : memref<128x128xbf16, #tpu.memory_space<vmem>>, vector<128x128xbf16>
    tpu.vector_store %arg7[%c0_39, %c0_40], %104 {strides = array<i32>} : memref<128x128xbf16, #tpu.memory_space<vmem>>, vector<128x128xbf16>,
    return
  }
  func.func @transform_0(%arg0: i32) -> (i32, i32) {
    %c0_i32 = arith.constant 0 : i32
    %c0_i32_0 = arith.constant 0 : i32
    %c0_i32_1 = arith.constant 0 : i32
    return %c0_i32, %c0_i32_0 : i32, i32
  }
  func.func @transform_1(%arg0: i32) -> (i32, i32) {
    %c0_i32 = arith.constant 0 : i32
    %c0_i32_0 = arith.constant 0 : i32
    %c0_i32_1 = arith.constant 0 : i32
    return %c0_i32, %c0_i32_0 : i32, i32
  }
  func.func @transform_2(%arg0: i32) -> (i32, i32) {
    %c0_i32 = arith.constant 0 : i32
    %c0_i32_0 = arith.constant 0 : i32
    %c0_i32_1 = arith.constant 0 : i32
    return %c0_i32, %c0_i32_0 : i32, i32
  }
  func.func @transform_3(%arg0: i32) -> (i32, i32) {
    %c0_i32 = arith.constant 0 : i32
    %c0_i32_0 = arith.constant 0 : i32
    %c0_i32_1 = arith.constant 0 : i32
    return %c0_i32, %c0_i32_0 : i32, i32
  }
  func.func @transform_4(%arg0: i32) -> (i32, i32) {
    %c0_i32 = arith.constant 0 : i32
    %c0_i32_0 = arith.constant 0 : i32
    %c0_i32_1 = arith.constant 0 : i32
    return %c0_i32, %c0_i32_0 : i32, i32
  }
  func.func @transform_5(%arg0: i32) -> (i32, i32) {
    %c0_i32 = arith.constant 0 : i32
    %c0_i32_0 = arith.constant 0 : i32
    %c0_i32_1 = arith.constant 0 : i32
    return %c0_i32, %c0_i32_0 : i32, i32
  }
  func.func @transform_6(%arg0: i32) -> (i32, i32) {
    %c0_i32 = arith.constant 0 : i32
    %c0_i32_0 = arith.constant 0 : i32
    %c0_i32_1 = arith.constant 0 : i32
    return %c0_i32, %c0_i32_0 : i32, i32
  }
}

module attributes {stable_mosaic.version = 11 : i64} {
  func.func @_fc_fused_kernel(%arg0: i32, %arg1: memref<8x256xbf16, #tpu.memory_space<vmem>>, %arg2: memref<256x128xbf16, #tpu.memory_space<vmem>>, %arg3: memref<1x128xf32, #tpu.memory_space<vmem>>, %arg4: memref<128x128xbf16, #tpu.memory_space<vmem>>, %arg5: memref<1x128xf32, #tpu.memory_space<vmem>>, %arg6: memref<8x128xf32, #tpu.memory_space<vmem>>, %arg7: memref<8x128xf32, #tpu.memory_space<vmem>>) attributes {dimension_semantics = [#tpu.dimension_semantics<arbitrary>], iteration_bounds = array<i64: 1>, scalar_prefetch = 0 : i64, scratch_operands = 0 : i64, tpu.core_type = #tpu.core_type<tc>, window_params = [{pipeline_mode = #tpu.pipeline_mode<synchronous>, transform_indices = @transform_0, window_bounds = array<i64: 8, 256>}, {pipeline_mode = #tpu.pipeline_mode<synchronous>, transform_indices = @transform_1, window_bounds = array<i64: 256, 128>}, {pipeline_mode = #tpu.pipeline_mode<synchronous>, transform_indices = @transform_2, window_bounds = array<i64: 1, 128>}, {pipeline_mode = #tpu.pipeline_mode<synchronous>, transform_indices = @transform_3, window_bounds = array<i64: 128, 128>}, {pipeline_mode = #tpu.pipeline_mode<synchronous>, transform_indices = @transform_4, window_bounds = array<i64: 1, 128>}, {pipeline_mode = #tpu.pipeline_mode<synchronous>, transform_indices = @transform_5, window_bounds = array<i64: 8, 128>}, {pipeline_mode = #tpu.pipeline_mode<synchronous>, transform_indices = @transform_6, window_bounds = array<i64: 8, 128>}]} {
    %c0 = arith.constant 0 : index
    %c0_0 = arith.constant 0 : index
    %0 = vector.load %arg1[%c0, %c0_0] : memref<8x256xbf16, #tpu.memory_space<vmem>>, vector<8x256xbf16>
    %c0_1 = arith.constant 0 : index
    %c0_2 = arith.constant 0 : index
    %1 = vector.load %arg2[%c0_1, %c0_2] : memref<256x128xbf16, #tpu.memory_space<vmem>>, vector<256x128xbf16>
    %cst = arith.constant dense<0.000000e+00> : vector<8x128xf32>
    %2 = tpu.matmul %0, %1, %cst {dimension_numbers = #tpu.dot_dimension_numbers<[1], [0], [0], [1], [0, 0, 1, 1], [], []>} : vector<8x256xbf16>, vector<256x128xbf16>, vector<8x128xf32> -> vector<8x128xf32>
    %c0_3 = arith.constant 0 : index
    %c0_4 = arith.constant 0 : index
    %3 = vector.load %arg3[%c0_3, %c0_4] : memref<1x128xf32, #tpu.memory_space<vmem>>, vector<1x128xf32>
    %4 = vector.broadcast %3 : vector<1x128xf32> to vector<8x128xf32>
    %5 = arith.addf %2, %4 : vector<8x128xf32>
    %6 = arith.truncf %5 : vector<8x128xf32> to vector<8x128xbf16>
    %c0_5 = arith.constant 0 : index
    %c0_6 = arith.constant 0 : index
    %7 = vector.load %arg4[%c0_5, %c0_6] : memref<128x128xbf16, #tpu.memory_space<vmem>>, vector<128x128xbf16>
    %cst_7 = arith.constant dense<0.000000e+00> : vector<8x128xf32>
    %8 = tpu.matmul %6, %7, %cst_7 {dimension_numbers = #tpu.dot_dimension_numbers<[1], [0], [0], [1], [0, 0, 1, 1], [], []>} : vector<8x128xbf16>, vector<128x128xbf16>, vector<8x128xf32> -> vector<8x128xf32>
    %c0_8 = arith.constant 0 : index
    %c0_9 = arith.constant 0 : index
    %9 = vector.load %arg5[%c0_8, %c0_9] : memref<1x128xf32, #tpu.memory_space<vmem>>, vector<1x128xf32>
    %10 = vector.broadcast %9 : vector<1x128xf32> to vector<8x128xf32>
    %11 = arith.addf %8, %10 : vector<8x128xf32>
    %c0_10 = arith.constant 0 : index
    %c0_11 = arith.constant 0 : index
    %12 = vector.load %arg6[%c0_10, %c0_11] : memref<8x128xf32, #tpu.memory_space<vmem>>, vector<8x128xf32>
    tpu.vector_store %arg6[%c0_10, %c0_11], %5 {strides = array<i32>} : memref<8x128xf32, #tpu.memory_space<vmem>>, vector<8x128xf32>,
    %c0_12 = arith.constant 0 : index
    %c0_13 = arith.constant 0 : index
    %13 = vector.load %arg7[%c0_12, %c0_13] : memref<8x128xf32, #tpu.memory_space<vmem>>, vector<8x128xf32>
    tpu.vector_store %arg7[%c0_12, %c0_13], %11 {strides = array<i32>} : memref<8x128xf32, #tpu.memory_space<vmem>>, vector<8x128xf32>,
    return
  }
  func.func @transform_0(%arg0: i32) -> (i32, i32) {
    %c0_i32 = arith.constant 0 : i32
    %c0_i32_0 = arith.constant 0 : i32
    %c0_i32_1 = arith.constant 0 : i32
    return %c0_i32, %c0_i32_0 : i32, i32
  }
  func.func @transform_1(%arg0: i32) -> (i32, i32) {
    %c0_i32 = arith.constant 0 : i32
    %c0_i32_0 = arith.constant 0 : i32
    %c0_i32_1 = arith.constant 0 : i32
    return %c0_i32, %c0_i32_0 : i32, i32
  }
  func.func @transform_2(%arg0: i32) -> (i32, i32) {
    %c0_i32 = arith.constant 0 : i32
    %c0_i32_0 = arith.constant 0 : i32
    %c0_i32_1 = arith.constant 0 : i32
    return %c0_i32, %c0_i32_0 : i32, i32
  }
  func.func @transform_3(%arg0: i32) -> (i32, i32) {
    %c0_i32 = arith.constant 0 : i32
    %c0_i32_0 = arith.constant 0 : i32
    %c0_i32_1 = arith.constant 0 : i32
    return %c0_i32, %c0_i32_0 : i32, i32
  }
  func.func @transform_4(%arg0: i32) -> (i32, i32) {
    %c0_i32 = arith.constant 0 : i32
    %c0_i32_0 = arith.constant 0 : i32
    %c0_i32_1 = arith.constant 0 : i32
    return %c0_i32, %c0_i32_0 : i32, i32
  }
  func.func @transform_5(%arg0: i32) -> (i32, i32) {
    %c0_i32 = arith.constant 0 : i32
    %c0_i32_0 = arith.constant 0 : i32
    %c0_i32_1 = arith.constant 0 : i32
    return %c0_i32, %c0_i32_0 : i32, i32
  }
  func.func @transform_6(%arg0: i32) -> (i32, i32) {
    %c0_i32 = arith.constant 0 : i32
    %c0_i32_0 = arith.constant 0 : i32
    %c0_i32_1 = arith.constant 0 : i32
    return %c0_i32, %c0_i32_0 : i32, i32
  }
}

</mosaic_0001>

<llo_original>
// kernel: _forward_impl.3
$region0: #{_forward_impl.3}
  #allocation0 [shape = 'u32[]', space=smem, size = 0x4, offset = 0x4, fixed_abs, tag = 'smem constant byte address 0x4 - core index']
  #allocation1 [shape = 'u32[144,128]{1,0:T(1,128)}', space=vmem, size = 0x12000, scoped, tag = 'internal scratch']
  %s0 = inlined_call_operand.vmem [shape: bf16[8,256], index: 0, kind: input, shape index: {}]
  %s1 = inlined_call_operand.vmem [shape: bf16[256,128], index: 1, kind: input, shape index: {}]
  %s2 = inlined_call_operand.vmem [shape: f32[1,128], index: 2, kind: input, shape index: {}]
  %s3 = inlined_call_operand.vmem [shape: bf16[128,128], index: 3, kind: input, shape index: {}]
  %s4 = inlined_call_operand.vmem [shape: f32[1,128], index: 4, kind: input, shape index: {}]
  %s5 = inlined_call_operand.vmem [shape: f32[8,128], index: 5, kind: output, shape index: {0}]
  %s6 = inlined_call_operand.hbm [shape: f32[8,128], index: 6, kind: output, shape index: {1}]
  %7 = xla_tuple %s5, %s6
  %s8 = sld [smem:[#allocation0]]
  $region38: #{_forward_impl.3} parent=0
    _
  %s10 = ssub.s32 1, %s8
  %s11 = scalar_select 0, %s10, %s8
  $region1: #{_forward_impl.3} parent=0
    #allocation2 [shape = 'u8[4096]{0}', space=vmem, size = 0x1000, scoped, tag = 'output window, operand 1, single buffered']
    #allocation3 [shape = 's32[1]{0}', space=sflag, size = 0x4, scoped, tag = 'scoped memory for _forward_impl.3']
    %12 = vsyncpa [#allocation3], 0
    // Predicated region
    $region2: #{_forward_impl.3} parent=1 // pred_check
      _
    $region3: #{_forward_impl.3} parent=1 // pred_check_branch
      %14 = sbr.rel (0) target = $region5
    $region4: #{_forward_impl.3} parent=1 // pred_region
      _
    $region5: #{_forward_impl.3} parent=1 // pred_fallthru
      _
    // Predicated region
    $region6: #{_forward_impl.3} parent=1 // pred_check
      _
    $region7: #{_forward_impl.3} parent=1 // pred_check_branch
      %16 = sbr.rel (0) target = $region9
    $region8: #{_forward_impl.3} parent=1 // pred_region
      _
    $region9: #{_forward_impl.3} parent=1 // pred_fallthru
      _
    // Predicated region
    $region10: #{_forward_impl.3} parent=1 // pred_check
      _
    $region11: #{_forward_impl.3} parent=1 // pred_check_branch
      %18 = sbr.rel (0) target = $region13
    $region12: #{_forward_impl.3} parent=1 // pred_region
      _
    $region13: #{_forward_impl.3} parent=1 // pred_fallthru
      _
    // Predicated region
    $region14: #{_forward_impl.3} parent=1 // pred_check
      _
    $region15: #{_forward_impl.3} parent=1 // pred_check_branch
      %20 = sbr.rel (0) target = $region17
    $region16: #{_forward_impl.3} parent=1 // pred_region
      _
    $region17: #{_forward_impl.3} parent=1 // pred_fallthru
      _
    // Predicated region
    $region18: #{_forward_impl.3} parent=1 // pred_check
      _
    $region19: #{_forward_impl.3} parent=1 // pred_check_branch
      %22 = sbr.rel (0) target = $region21
    $region20: #{_forward_impl.3} parent=1 // pred_region
      _
    $region21: #{_forward_impl.3} parent=1 // pred_fallthru
      _
    %v24 = vld [vmem:[%s0] sm:$0xff]
    %v25 = vld [vmem:[%s1] sm:$0xf]
    %v26 = vld [vmem:[%s1 + $0x4] sm:$0xf]
    %v27 = vld [vmem:[%s1 + $0x8] sm:$0xf]
    %v28 = vld [vmem:[%s1 + $0xc] sm:$0xf]
    %v29 = vld [vmem:[%s1 + $0x10] sm:$0xf]
    %v30 = vld [vmem:[%s1 + $0x14] sm:$0xf]
    %v31 = vld [vmem:[%s1 + $0x18] sm:$0xf]
    %v32 = vld [vmem:[%s1 + $0x1c] sm:$0xf]
    %v33 = vld [vmem:[%s1 + $0x20] sm:$0xf]
    %v34 = vld [vmem:[%s1 + $0x24] sm:$0xf]
    %v35 = vld [vmem:[%s1 + $0x28] sm:$0xf]
    %v36 = vld [vmem:[%s1 + $0x2c] sm:$0xf]
    %v37 = vld [vmem:[%s1 + $0x30] sm:$0xf]
    %v38 = vld [vmem:[%s1 + $0x34] sm:$0xf]
    %v39 = vld [vmem:[%s1 + $0x38] sm:$0xf]
    %v40 = vld [vmem:[%s1 + $0x3c] sm:$0xf]
    %v41 = vld [vmem:[%s1 + $0x40] sm:$0xf]
    %v42 = vld [vmem:[%s1 + $0x44] sm:$0xf]
    %v43 = vld [vmem:[%s1 + $0x48] sm:$0xf]
    %v44 = vld [vmem:[%s1 + $0x4c] sm:$0xf]
    %v45 = vld [vmem:[%s1 + $0x50] sm:$0xf]
    %v46 = vld [vmem:[%s1 + $0x54] sm:$0xf]
    %v47 = vld [vmem:[%s1 + $0x58] sm:$0xf]
    %v48 = vld [vmem:[%s1 + $0x5c] sm:$0xf]
    %v49 = vld [vmem:[%s1 + $0x60] sm:$0xf]
    %v50 = vld [vmem:[%s1 + $0x64] sm:$0xf]
    %v51 = vld [vmem:[%s1 + $0x68] sm:$0xf]
    %v52 = vld [vmem:[%s1 + $0x6c] sm:$0xf]
    %v53 = vld [vmem:[%s1 + $0x70] sm:$0xf]
    %v54 = vld [vmem:[%s1 + $0x74] sm:$0xf]
    %v55 = vld [vmem:[%s1 + $0x78] sm:$0xf]
    %v56 = vld [vmem:[%s1 + $0x7c] sm:$0xf]
    %v57 = vld [vmem:[%s2] sm:$0x1]
    %v59 = vlaneseq
    %v60 = vshrl.u32 %v59, 7
    %v61 = vsub.s32 0, %v60
    %v62 = vrot.slane %v57, %v61
    %v65 = vunpack.c.l.b16 %v24
    %v66 = vunpack.c.h.b16 %v24
    %v67 = vpack.c.b16 %v65, %v65
    %v68 = vpack.c.b16 %v66, %v66
    %v103 = vunpack.c.l.b16 %v25
    %v104 = vunpack.c.l.b16 %v26
    %v105 = vunpack.c.l.b16 %v27
    %v106 = vunpack.c.l.b16 %v28
    %v107 = vunpack.c.l.b16 %v29
    %v108 = vunpack.c.l.b16 %v30
    %v109 = vunpack.c.l.b16 %v31
    %v110 = vunpack.c.l.b16 %v32
    %v111 = vunpack.c.l.b16 %v33
    %v112 = vunpack.c.l.b16 %v34
    %v113 = vunpack.c.l.b16 %v35
    %v114 = vunpack.c.l.b16 %v36
    %v115 = vunpack.c.l.b16 %v37
    %v116 = vunpack.c.l.b16 %v38
    %v117 = vunpack.c.l.b16 %v39
    %v118 = vunpack.c.l.b16 %v40
    %v119 = vunpack.c.l.b16 %v41
    %v120 = vunpack.c.l.b16 %v42
    %v121 = vunpack.c.l.b16 %v43
    %v122 = vunpack.c.l.b16 %v44
    %v123 = vunpack.c.l.b16 %v45
    %v124 = vunpack.c.l.b16 %v46
    %v125 = vunpack.c.l.b16 %v47
    %v126 = vunpack.c.l.b16 %v48
    %v127 = vunpack.c.l.b16 %v49
    %v128 = vunpack.c.l.b16 %v50
    %v129 = vunpack.c.l.b16 %v51
    %v130 = vunpack.c.l.b16 %v52
    %v131 = vunpack.c.l.b16 %v53
    %v132 = vunpack.c.l.b16 %v54
    %v133 = vunpack.c.l.b16 %v55
    %v134 = vunpack.c.l.b16 %v56
    %v135 = vpack.c.b16 %v104, %v103
    %v136 = vpack.c.b16 %v106, %v105
    %v137 = vpack.c.b16 %v108, %v107
    %v138 = vpack.c.b16 %v110, %v109
    %v139 = vpack.c.b16 %v112, %v111
    %v140 = vpack.c.b16 %v114, %v113
    %v141 = vpack.c.b16 %v116, %v115
    %v142 = vpack.c.b16 %v118, %v117
    %v143 = vpack.c.b16 %v120, %v119
    %v144 = vpack.c.b16 %v122, %v121
    %v145 = vpack.c.b16 %v124, %v123
    %v146 = vpack.c.b16 %v126, %v125
    %v147 = vpack.c.b16 %v128, %v127
    %v148 = vpack.c.b16 %v130, %v129
    %v149 = vpack.c.b16 %v132, %v131
    %v150 = vpack.c.b16 %v134, %v133
    %167 = vmatprep.subr.bf16.mxu0 0
    %168 = vmatpush1.bf16.msra.mxu0 %v142
    %169 = vmatprep.subr.bf16.mxu0 0
    %170 = vmatpush1.bf16.msra.mxu0 %v141
    %171 = vmatprep.subr.bf16.mxu0 0
    %172 = vmatpush1.bf16.msra.mxu0 %v140
    %173 = vmatprep.subr.bf16.mxu0 0
    %174 = vmatpush1.bf16.msra.mxu0 %v139
    %175 = vmatprep.subr.bf16.mxu0 0
    %176 = vmatpush1.bf16.msra.mxu0 %v138
    %177 = vmatprep.subr.bf16.mxu0 0
    %178 = vmatpush1.bf16.msra.mxu0 %v137
    %179 = vmatprep.subr.bf16.mxu0 0
    %180 = vmatpush1.bf16.msra.mxu0 %v136
    %181 = vmatprep.subr.bf16.mxu0 0
    %182 = vmatpush1.bf16.msra.mxu0 %v135
    %183 = vmatprep.subr.bf16.mxu0 0
    %184 = vmatpush2.bf16.msra.mxu0 %v150
    %185 = vmatprep.subr.bf16.mxu0 0
    %186 = vmatpush2.bf16.msra.mxu0 %v149
    %187 = vmatprep.subr.bf16.mxu0 0
    %188 = vmatpush2.bf16.msra.mxu0 %v148
    %189 = vmatprep.subr.bf16.mxu0 0
    %190 = vmatpush2.bf16.msra.mxu0 %v147
    %191 = vmatprep.subr.bf16.mxu0 0
    %192 = vmatpush2.bf16.msra.mxu0 %v146
    %193 = vmatprep.subr.bf16.mxu0 0
    %194 = vmatpush2.bf16.msra.mxu0 %v145
    %195 = vmatprep.subr.bf16.mxu0 0
    %196 = vmatpush2.bf16.msra.mxu0 %v144
    %197 = vmatprep.subr.bf16.mxu0 0
    %198 = vmatpush2.bf16.msra.mxu0 %v143
    %199 = vmatprep.mubr.bf16.mxu0 %v68
    %200 = vmatmul.mubr.bf16.gmra.mxu0 %v67
    %v201 = vpop.f32.mrf.mxu0
    %v202 = vadd.f32 %v62, %v201
    %v203 = vpop.f32.mrf.mxu0
    %v204 = vpop.f32.mrf.mxu0
    %v205 = vpop.f32.mrf.mxu0
    %206 = vdwg.mxu0
    %v207 = vpack.c.bf16 %v202, %v202
    %v208 = vld [vmem:[%s3] sm:$0xf]
    %v209 = vld [vmem:[%s3 + $0x4] sm:$0xf]
    %v210 = vld [vmem:[%s3 + $0x8] sm:$0xf]
    %v211 = vld [vmem:[%s3 + $0xc] sm:$0xf]
    %v212 = vld [vmem:[%s3 + $0x10] sm:$0xf]
    %v213 = vld [vmem:[%s3 + $0x14] sm:$0xf]
    %v214 = vld [vmem:[%s3 + $0x18] sm:$0xf]
    %v215 = vld [vmem:[%s3 + $0x1c] sm:$0xf]
    %v216 = vld [vmem:[%s3 + $0x20] sm:$0xf]
    %v217 = vld [vmem:[%s3 + $0x24] sm:$0xf]
    %v218 = vld [vmem:[%s3 + $0x28] sm:$0xf]
    %v219 = vld [vmem:[%s3 + $0x2c] sm:$0xf]
    %v220 = vld [vmem:[%s3 + $0x30] sm:$0xf]
    %v221 = vld [vmem:[%s3 + $0x34] sm:$0xf]
    %v222 = vld [vmem:[%s3 + $0x38] sm:$0xf]
    %v223 = vld [vmem:[%s3 + $0x3c] sm:$0xf]
    %v224 = vld [vmem:[%s4] sm:$0x1]
    %v226 = vlaneseq
    %v227 = vshrl.u32 %v226, 7
    %v228 = vsub.s32 0, %v227
    %v229 = vrot.slane %v224, %v228
    %v247 = vunpack.c.l.b16 %v208
    %v248 = vunpack.c.l.b16 %v209
    %v249 = vunpack.c.l.b16 %v210
    %v250 = vunpack.c.l.b16 %v211
    %v251 = vunpack.c.l.b16 %v212
    %v252 = vunpack.c.l.b16 %v213
    %v253 = vunpack.c.l.b16 %v214
    %v254 = vunpack.c.l.b16 %v215
    %v255 = vunpack.c.l.b16 %v216
    %v256 = vunpack.c.l.b16 %v217
    %v257 = vunpack.c.l.b16 %v218
    %v258 = vunpack.c.l.b16 %v219
    %v259 = vunpack.c.l.b16 %v220
    %v260 = vunpack.c.l.b16 %v221
    %v261 = vunpack.c.l.b16 %v222
    %v262 = vunpack.c.l.b16 %v223
    %v263 = vpack.c.b16 %v248, %v247
    %v264 = vpack.c.b16 %v250, %v249
    %v265 = vpack.c.b16 %v252, %v251
    %v266 = vpack.c.b16 %v254, %v253
    %v267 = vpack.c.b16 %v256, %v255
    %v268 = vpack.c.b16 %v258, %v257
    %v269 = vpack.c.b16 %v260, %v259
    %v270 = vpack.c.b16 %v262, %v261
    %279 = vmatprep.subr.bf16.mxu0 0
    %280 = vmatpush1.bf16.msra.mxu0 %v270
    %281 = vmatprep.subr.bf16.mxu0 0
    %282 = vmatpush1.bf16.msra.mxu0 %v269
    %283 = vmatprep.subr.bf16.mxu0 0
    %284 = vmatpush1.bf16.msra.mxu0 %v268
    %285 = vmatprep.subr.bf16.mxu0 0
    %286 = vmatpush1.bf16.msra.mxu0 %v267
    %287 = vmatprep.subr.bf16.mxu0 0
    %288 = vmatpush1.bf16.msra.mxu0 %v266
    %289 = vmatprep.subr.bf16.mxu0 0
    %290 = vmatpush1.bf16.msra.mxu0 %v265
    %291 = vmatprep.subr.bf16.mxu0 0
    %292 = vmatpush1.bf16.msra.mxu0 %v264
    %293 = vmatprep.subr.bf16.mxu0 0
    %294 = vmatpush1.bf16.msra.mxu0 %v263
    %295 = vmatprep.subr.bf16.mxu0 0
    %296 = vmatpush2.bf16.msra.mxu0 0
    %297 = vmatprep.subr.bf16.mxu0 0
    %298 = vmatpush2.bf16.msra.mxu0 0
    %299 = vmatprep.subr.bf16.mxu0 0
    %300 = vmatpush2.bf16.msra.mxu0 0
    %301 = vmatprep.subr.bf16.mxu0 0
    %302 = vmatpush2.bf16.msra.mxu0 0
    %303 = vmatprep.subr.bf16.mxu0 0
    %304 = vmatpush2.bf16.msra.mxu0 0
    %305 = vmatprep.subr.bf16.mxu0 0
    %306 = vmatpush2.bf16.msra.mxu0 0
    %307 = vmatprep.subr.bf16.mxu0 0
    %308 = vmatpush2.bf16.msra.mxu0 0
    %309 = vmatprep.subr.bf16.mxu0 0
    %310 = vmatpush2.bf16.msra.mxu0 0
    %311 = vmatprep.mubr.bf16.mxu0 0
    %312 = vmatmul.mubr.bf16.gmra.mxu0 %v207
    %v313 = vpop.f32.mrf.mxu0
    %v314 = vadd.f32 %v229, %v313
    %v315 = vpop.f32.mrf.mxu0
    %v316 = vpop.f32.mrf.mxu0
    %v317 = vpop.f32.mrf.mxu0
    %318 = vdwg.mxu0
    %319 = vst [vmem:[%s5] sm:$0xff] %v202
    %320 = vst [vmem:[#allocation2] sm:$0xff] %v314
    // Predicated region
    $region22: #{_forward_impl.3} parent=1 // pred_check
      _
    $region23: #{_forward_impl.3} parent=1 // pred_check_branch
      %322 = sbr.rel (0) target = $region25
    $region24: #{_forward_impl.3} parent=1 // pred_region
      _
    $region25: #{_forward_impl.3} parent=1 // pred_fallthru
      _
    // Predicated region
    $region26: #{_forward_impl.3} parent=1 // pred_check
      _
    $region27: #{_forward_impl.3} parent=1 // pred_check_branch
      %324 = sbr.rel (0) target = $region29
    $region28: #{_forward_impl.3} parent=1 // pred_region
      %s326 = ssub.s32 128, 128
      %327 = vsyncadd [#allocation3], %s326
      %s329 = sshll.u32 [#allocation2], 4
      %s330 = int_to_ptr.vmem [resolvable:$true] %s329
      %332 = dma.vmem_to_hbm [thread:$0]  %s330, 128, %s6, [#allocation3]
    $region29: #{_forward_impl.3} parent=1 // pred_fallthru
      _
    // Predicated region
    $region30: #{_forward_impl.3} parent=1 // pred_check
      _
    $region31: #{_forward_impl.3} parent=1 // pred_check_branch
      %334 = sbr.rel (0) target = $region33
    $region32: #{_forward_impl.3} parent=1 // pred_region
      _
    $region33: #{_forward_impl.3} parent=1 // pred_fallthru
      _
    // Predicated region
    $region34: #{_forward_impl.3} parent=1 // pred_check
      _
    $region35: #{_forward_impl.3} parent=1 // pred_check_branch
      %336 = sbr.rel (0) target = $region37
    $region36: #{_forward_impl.3} parent=1 // pred_region
      %337 = dma.done [#allocation3], 128
    $region37: #{_forward_impl.3} parent=1 // pred_fallthru
      _
    %338 = vsyncpa [#allocation3], 1

// kernel: _forward_impl.2
$region0: #{_forward_impl.2}
  #allocation0 [shape = 'u32[]', space=smem, size = 0x4, offset = 0x4, fixed_abs, tag = 'smem constant byte address 0x4 - core index']
  #allocation1 [shape = 'u32[144,128]{1,0:T(1,128)}', space=vmem, size = 0x12000, scoped, tag = 'internal scratch']
  %s0 = inlined_call_operand.vmem [shape: bf16[512,128], index: 0, kind: input, shape index: {}]
  %s1 = inlined_call_operand.vmem [shape: bf16[128,128], index: 1, kind: input, shape index: {}]
  %s2 = inlined_call_operand.vmem [shape: f32[1,128], index: 2, kind: input, shape index: {}]
  %s3 = inlined_call_operand.vmem [shape: bf16[128,128], index: 3, kind: input, shape index: {}]
  %s4 = inlined_call_operand.vmem [shape: f32[1,128], index: 4, kind: input, shape index: {}]
  %s5 = inlined_call_operand.vmem [shape: bf16[128,128], index: 5, kind: output, shape index: {0}]
  %s6 = inlined_call_operand.vmem [shape: bf16[128,128], index: 6, kind: output, shape index: {1}]
  %7 = xla_tuple %s5, %s6
  %s8 = sld [smem:[#allocation0]]
  $region38: #{_forward_impl.2} parent=0
    _
  %s10 = ssub.s32 1, %s8
  %s11 = scalar_select 0, %s10, %s8
  // Predicated region
  $region2: #{_forward_impl.2} parent=0 // pred_check
    _
  $region3: #{_forward_impl.2} parent=0 // pred_check_branch
    %13 = sbr.rel (0) target = $region5
  $region4: #{_forward_impl.2} parent=0 // pred_region
    _
  $region5: #{_forward_impl.2} parent=0 // pred_fallthru
    _
  // Predicated region
  $region6: #{_forward_impl.2} parent=0 // pred_check
    _
  $region7: #{_forward_impl.2} parent=0 // pred_check_branch
    %15 = sbr.rel (0) target = $region9
  $region8: #{_forward_impl.2} parent=0 // pred_region
    _
  $region9: #{_forward_impl.2} parent=0 // pred_fallthru
    _
  // Predicated region
  $region10: #{_forward_impl.2} parent=0 // pred_check
    _
  $region11: #{_forward_impl.2} parent=0 // pred_check_branch
    %17 = sbr.rel (0) target = $region13
  $region12: #{_forward_impl.2} parent=0 // pred_region
    _
  $region13: #{_forward_impl.2} parent=0 // pred_fallthru
    _
  // Predicated region
  $region14: #{_forward_impl.2} parent=0 // pred_check
    _
  $region15: #{_forward_impl.2} parent=0 // pred_check_branch
    %19 = sbr.rel (0) target = $region17
  $region16: #{_forward_impl.2} parent=0 // pred_region
    _
  $region17: #{_forward_impl.2} parent=0 // pred_fallthru
    _
  // Predicated region
  $region18: #{_forward_impl.2} parent=0 // pred_check
    _
  $region19: #{_forward_impl.2} parent=0 // pred_check_branch
    %21 = sbr.rel (0) target = $region21
  $region20: #{_forward_impl.2} parent=0 // pred_region
    _
  $region21: #{_forward_impl.2} parent=0 // pred_fallthru
    _
  %v23 = vld [vmem:[%s0] sm:$0xf]
  %v24 = vld [vmem:[%s0 + $0x4] sm:$0xf]
  %v25 = vld [vmem:[%s0 + $0x8] sm:$0xf]
  %v26 = vld [vmem:[%s0 + $0xc] sm:$0xf]
  %v27 = vld [vmem:[%s0 + $0x10] sm:$0xf]
  %v28 = vld [vmem:[%s0 + $0x14] sm:$0xf]
  %v29 = vld [vmem:[%s0 + $0x18] sm:$0xf]
  %v30 = vld [vmem:[%s0 + $0x1c] sm:$0xf]
  %v31 = vld [vmem:[%s0 + $0x20] sm:$0xf]
  %v32 = vld [vmem:[%s0 + $0x24] sm:$0xf]
  %v33 = vld [vmem:[%s0 + $0x28] sm:$0xf]
  %v34 = vld [vmem:[%s0 + $0x2c] sm:$0xf]
  %v35 = vld [vmem:[%s0 + $0x30] sm:$0xf]
  %v36 = vld [vmem:[%s0 + $0x34] sm:$0xf]
  %v37 = vld [vmem:[%s0 + $0x38] sm:$0xf]
  %v38 = vld [vmem:[%s0 + $0x3c] sm:$0xf]
  %v39 = vld [vmem:[%s0 + $0x40] sm:$0xf]
  %v40 = vld [vmem:[%s0 + $0x44] sm:$0xf]
  %v41 = vld [vmem:[%s0 + $0x48] sm:$0xf]
  %v42 = vld [vmem:[%s0 + $0x4c] sm:$0xf]
  %v43 = vld [vmem:[%s0 + $0x50] sm:$0xf]
  %v44 = vld [vmem:[%s0 + $0x54] sm:$0xf]
  %v45 = vld [vmem:[%s0 + $0x58] sm:$0xf]
  %v46 = vld [vmem:[%s0 + $0x5c] sm:$0xf]
  %v47 = vld [vmem:[%s0 + $0x60] sm:$0xf]
  %v48 = vld [vmem:[%s0 + $0x64] sm:$0xf]
  %v49 = vld [vmem:[%s0 + $0x68] sm:$0xf]
  %v50 = vld [vmem:[%s0 + $0x6c] sm:$0xf]
  %v51 = vld [vmem:[%s0 + $0x70] sm:$0xf]
  %v52 = vld [vmem:[%s0 + $0x74] sm:$0xf]
  %v53 = vld [vmem:[%s0 + $0x78] sm:$0xf]
  %v54 = vld [vmem:[%s0 + $0x7c] sm:$0xf]
  %v55 = vld [vmem:[%s0 + $0x80] sm:$0xf]
  %v56 = vld [vmem:[%s0 + $0x84] sm:$0xf]
  %v57 = vld [vmem:[%s0 + $0x88] sm:$0xf]
  %v58 = vld [vmem:[%s0 + $0x8c] sm:$0xf]
  %v59 = vld [vmem:[%s0 + $0x90] sm:$0xf]
  %v60 = vld [vmem:[%s0 + $0x94] sm:$0xf]
  %v61 = vld [vmem:[%s0 + $0x98] sm:$0xf]
  %v62 = vld [vmem:[%s0 + $0x9c] sm:$0xf]
  %v63 = vld [vmem:[%s0 + $0xa0] sm:$0xf]
  %v64 = vld [vmem:[%s0 + $0xa4] sm:$0xf]
  %v65 = vld [vmem:[%s0 + $0xa8] sm:$0xf]
  %v66 = vld [vmem:[%s0 + $0xac] sm:$0xf]
  %v67 = vld [vmem:[%s0 + $0xb0] sm:$0xf]
  %v68 = vld [vmem:[%s0 + $0xb4] sm:$0xf]
  %v69 = vld [vmem:[%s0 + $0xb8] sm:$0xf]
  %v70 = vld [vmem:[%s0 + $0xbc] sm:$0xf]
  %v71 = vld [vmem:[%s0 + $0xc0] sm:$0xf]
  %v72 = vld [vmem:[%s0 + $0xc4] sm:$0xf]
  %v73 = vld [vmem:[%s0 + $0xc8] sm:$0xf]
  %v74 = vld [vmem:[%s0 + $0xcc] sm:$0xf]
  %v75 = vld [vmem:[%s0 + $0xd0] sm:$0xf]
  %v76 = vld [vmem:[%s0 + $0xd4] sm:$0xf]
  %v77 = vld [vmem:[%s0 + $0xd8] sm:$0xf]
  %v78 = vld [vmem:[%s0 + $0xdc] sm:$0xf]
  %v79 = vld [vmem:[%s0 + $0xe0] sm:$0xf]
  %v80 = vld [vmem:[%s0 + $0xe4] sm:$0xf]
  %v81 = vld [vmem:[%s0 + $0xe8] sm:$0xf]
  %v82 = vld [vmem:[%s0 + $0xec] sm:$0xf]
  %v83 = vld [vmem:[%s0 + $0xf0] sm:$0xf]
  %v84 = vld [vmem:[%s0 + $0xf4] sm:$0xf]
  %v85 = vld [vmem:[%s0 + $0xf8] sm:$0xf]
  %v86 = vld [vmem:[%s0 + $0xfc] sm:$0xf]
  %v87 = vld [vmem:[%s1] sm:$0xf]
  %v88 = vld [vmem:[%s1 + $0x4] sm:$0xf]
  %v89 = vld [vmem:[%s1 + $0x8] sm:$0xf]
  %v90 = vld [vmem:[%s1 + $0xc] sm:$0xf]
  %v91 = vld [vmem:[%s1 + $0x10] sm:$0xf]
  %v92 = vld [vmem:[%s1 + $0x14] sm:$0xf]
  %v93 = vld [vmem:[%s1 + $0x18] sm:$0xf]
  %v94 = vld [vmem:[%s1 + $0x1c] sm:$0xf]
  %v95 = vld [vmem:[%s1 + $0x20] sm:$0xf]
  %v96 = vld [vmem:[%s1 + $0x24] sm:$0xf]
  %v97 = vld [vmem:[%s1 + $0x28] sm:$0xf]
  %v98 = vld [vmem:[%s1 + $0x2c] sm:$0xf]
  %v99 = vld [vmem:[%s1 + $0x30] sm:$0xf]
  %v100 = vld [vmem:[%s1 + $0x34] sm:$0xf]
  %v101 = vld [vmem:[%s1 + $0x38] sm:$0xf]
  %v102 = vld [vmem:[%s1 + $0x3c] sm:$0xf]
  %v167 = vunpack.c.l.b16 %v23
  %v168 = vunpack.c.l.b16 %v24
  %v169 = vunpack.c.l.b16 %v25
  %v170 = vunpack.c.l.b16 %v26
  %v171 = vunpack.c.l.b16 %v27
  %v172 = vunpack.c.l.b16 %v28
  %v173 = vunpack.c.l.b16 %v29
  %v174 = vunpack.c.l.b16 %v30
  %v175 = vunpack.c.l.b16 %v31
  %v176 = vunpack.c.l.b16 %v32
  %v177 = vunpack.c.l.b16 %v33
  %v178 = vunpack.c.l.b16 %v34
  %v179 = vunpack.c.l.b16 %v35
  %v180 = vunpack.c.l.b16 %v36
  %v181 = vunpack.c.l.b16 %v37
  %v182 = vunpack.c.l.b16 %v38
  %v183 = vunpack.c.l.b16 %v39
  %v184 = vunpack.c.l.b16 %v40
  %v185 = vunpack.c.l.b16 %v41
  %v186 = vunpack.c.l.b16 %v42
  %v187 = vunpack.c.l.b16 %v43
  %v188 = vunpack.c.l.b16 %v44
  %v189 = vunpack.c.l.b16 %v45
  %v190 = vunpack.c.l.b16 %v46
  %v191 = vunpack.c.l.b16 %v47
  %v192 = vunpack.c.l.b16 %v48
  %v193 = vunpack.c.l.b16 %v49
  %v194 = vunpack.c.l.b16 %v50
  %v195 = vunpack.c.l.b16 %v51
  %v196 = vunpack.c.l.b16 %v52
  %v197 = vunpack.c.l.b16 %v53
  %v198 = vunpack.c.l.b16 %v54
  %v199 = vunpack.c.l.b16 %v55
  %v200 = vunpack.c.l.b16 %v56
  %v201 = vunpack.c.l.b16 %v57
  %v202 = vunpack.c.l.b16 %v58
  %v203 = vunpack.c.l.b16 %v59
  %v204 = vunpack.c.l.b16 %v60
  %v205 = vunpack.c.l.b16 %v61
  %v206 = vunpack.c.l.b16 %v62
  %v207 = vunpack.c.l.b16 %v63
  %v208 = vunpack.c.l.b16 %v64
  %v209 = vunpack.c.l.b16 %v65
  %v210 = vunpack.c.l.b16 %v66
  %v211 = vunpack.c.l.b16 %v67
  %v212 = vunpack.c.l.b16 %v68
  %v213 = vunpack.c.l.b16 %v69
  %v214 = vunpack.c.l.b16 %v70
  %v215 = vunpack.c.l.b16 %v71
  %v216 = vunpack.c.l.b16 %v72
  %v217 = vunpack.c.l.b16 %v73
  %v218 = vunpack.c.l.b16 %v74
  %v219 = vunpack.c.l.b16 %v75
  %v220 = vunpack.c.l.b16 %v76
  %v221 = vunpack.c.l.b16 %v77
  %v222 = vunpack.c.l.b16 %v78
  %v223 = vunpack.c.l.b16 %v79
  %v224 = vunpack.c.l.b16 %v80
  %v225 = vunpack.c.l.b16 %v81
  %v226 = vunpack.c.l.b16 %v82
  %v227 = vunpack.c.l.b16 %v83
  %v228 = vunpack.c.l.b16 %v84
  %v229 = vunpack.c.l.b16 %v85
  %v230 = vunpack.c.l.b16 %v86
  %v231 = vpack.c.b16 %v168, %v167
  %v232 = vpack.c.b16 %v170, %v169
  %v233 = vpack.c.b16 %v172, %v171
  %v234 = vpack.c.b16 %v174, %v173
  %v235 = vpack.c.b16 %v176, %v175
  %v236 = vpack.c.b16 %v178, %v177
  %v237 = vpack.c.b16 %v180, %v179
  %v238 = vpack.c.b16 %v182, %v181
  %v239 = vpack.c.b16 %v184, %v183
  %v240 = vpack.c.b16 %v186, %v185
  %v241 = vpack.c.b16 %v188, %v187
  %v242 = vpack.c.b16 %v190, %v189
  %v243 = vpack.c.b16 %v192, %v191
  %v244 = vpack.c.b16 %v194, %v193
  %v245 = vpack.c.b16 %v196, %v195
  %v246 = vpack.c.b16 %v198, %v197
  %v247 = vpack.c.b16 %v200, %v199
  %v248 = vpack.c.b16 %v202, %v201
  %v249 = vpack.c.b16 %v204, %v203
  %v250 = vpack.c.b16 %v206, %v205
  %v251 = vpack.c.b16 %v208, %v207
  %v252 = vpack.c.b16 %v210, %v209
  %v253 = vpack.c.b16 %v212, %v211
  %v254 = vpack.c.b16 %v214, %v213
  %v255 = vpack.c.b16 %v216, %v215
  %v256 = vpack.c.b16 %v218, %v217
  %v257 = vpack.c.b16 %v220, %v219
  %v258 = vpack.c.b16 %v222, %v221
  %v259 = vpack.c.b16 %v224, %v223
  %v260 = vpack.c.b16 %v226, %v225
  %v261 = vpack.c.b16 %v228, %v227
  %v262 = vpack.c.b16 %v230, %v229
  %v311 = vunpack.c.l.b16 %v87
  %v312 = vunpack.c.l.b16 %v88
  %v313 = vunpack.c.l.b16 %v89
  %v314 = vunpack.c.l.b16 %v90
  %v315 = vunpack.c.l.b16 %v91
  %v316 = vunpack.c.l.b16 %v92
  %v317 = vunpack.c.l.b16 %v93
  %v318 = vunpack.c.l.b16 %v94
  %v319 = vunpack.c.l.b16 %v95
  %v320 = vunpack.c.l.b16 %v96
  %v321 = vunpack.c.l.b16 %v97
  %v322 = vunpack.c.l.b16 %v98
  %v323 = vunpack.c.l.b16 %v99
  %v324 = vunpack.c.l.b16 %v100
  %v325 = vunpack.c.l.b16 %v101
  %v326 = vunpack.c.l.b16 %v102
  %v327 = vpack.c.b16 %v312, %v311
  %v328 = vpack.c.b16 %v314, %v313
  %v329 = vpack.c.b16 %v316, %v315
  %v330 = vpack.c.b16 %v318, %v317
  %v331 = vpack.c.b16 %v320, %v319
  %v332 = vpack.c.b16 %v322, %v321
  %v333 = vpack.c.b16 %v324, %v323
  %v334 = vpack.c.b16 %v326, %v325
  %343 = vmatprep.subr.bf16.mxu0 0
  %344 = vmatpush1.bf16.msra.mxu0 %v334
  %345 = vmatprep.subr.bf16.mxu0 0
  %346 = vmatpush1.bf16.msra.mxu0 %v333
  %347 = vmatprep.subr.bf16.mxu0 0
  %348 = vmatpush1.bf16.msra.mxu0 %v332
  %349 = vmatprep.subr.bf16.mxu0 0
  %350 = vmatpush1.bf16.msra.mxu0 %v331
  %351 = vmatprep.subr.bf16.mxu0 0
  %352 = vmatpush1.bf16.msra.mxu0 %v330
  %353 = vmatprep.subr.bf16.mxu0 0
  %354 = vmatpush1.bf16.msra.mxu0 %v329
  %355 = vmatprep.subr.bf16.mxu0 0
  %356 = vmatpush1.bf16.msra.mxu0 %v328
  %357 = vmatprep.subr.bf16.mxu0 0
  %358 = vmatpush1.bf16.msra.mxu0 %v327
  %359 = vmatprep.subr.bf16.mxu0 0
  %360 = vmatpush2.bf16.msra.mxu0 0
  %361 = vmatprep.subr.bf16.mxu0 0
  %362 = vmatpush2.bf16.msra.mxu0 0
  %363 = vmatprep.subr.bf16.mxu0 0
  %364 = vmatpush2.bf16.msra.mxu0 0
  %365 = vmatprep.subr.bf16.mxu0 0
  %366 = vmatpush2.bf16.msra.mxu0 0
  %367 = vmatprep.subr.bf16.mxu0 0
  %368 = vmatpush2.bf16.msra.mxu0 0
  %369 = vmatprep.subr.bf16.mxu0 0
  %370 = vmatpush2.bf16.msra.mxu0 0
  %371 = vmatprep.subr.bf16.mxu0 0
  %372 = vmatpush2.bf16.msra.mxu0 0
  %373 = vmatprep.subr.bf16.mxu0 0
  %374 = vmatpush2.bf16.msra.mxu0 0
  %375 = vmatprep.mubr.bf16.mxu0 0
  %376 = vmatmul.mubr.bf16.gmra.mxu0 %v231
  %v377 = vpop.f32.mrf.mxu0
  %v378 = vadd.f32 0.0, %v377
  %v379 = vpop.f32.mrf.mxu0
  %v380 = vpop.f32.mrf.mxu0
  %v381 = vadd.f32 0.0, %v380
  %v382 = vpop.f32.mrf.mxu0
  %383 = vmatprep.mubr.bf16.mxu0 0
  %384 = vmatmul.mubr.bf16.gmra.mxu0 %v232
  %v385 = vpop.f32.mrf.mxu0
  %v386 = vadd.f32 0.0, %v385
  %v387 = vpop.f32.mrf.mxu0
  %v388 = vpop.f32.mrf.mxu0
  %v389 = vadd.f32 0.0, %v388
  %v390 = vpop.f32.mrf.mxu0
  %391 = vmatprep.mubr.bf16.mxu0 0
  %392 = vmatmul.mubr.bf16.gmra.mxu0 %v233
  %v393 = vpop.f32.mrf.mxu0
  %v394 = vadd.f32 0.0, %v393
  %v395 = vpop.f32.mrf.mxu0
  %v396 = vpop.f32.mrf.mxu0
  %v397 = vadd.f32 0.0, %v396
  %v398 = vpop.f32.mrf.mxu0
  %399 = vmatprep.mubr.bf16.mxu0 0
  %400 = vmatmul.mubr.bf16.gmra.mxu0 %v234
  %v401 = vpop.f32.mrf.mxu0
  %v402 = vadd.f32 0.0, %v401
  %v403 = vpop.f32.mrf.mxu0
  %v404 = vpop.f32.mrf.mxu0
  %v405 = vadd.f32 0.0, %v404
  %v406 = vpop.f32.mrf.mxu0
  %407 = vmatprep.mubr.bf16.mxu0 0
  %408 = vmatmul.mubr.bf16.gmra.mxu0 %v235
  %v409 = vpop.f32.mrf.mxu0
  %v410 = vadd.f32 0.0, %v409
  %v411 = vpop.f32.mrf.mxu0
  %v412 = vpop.f32.mrf.mxu0
  %v413 = vadd.f32 0.0, %v412
  %v414 = vpop.f32.mrf.mxu0
  %415 = vmatprep.mubr.bf16.mxu0 0
  %416 = vmatmul.mubr.bf16.gmra.mxu0 %v236
  %v417 = vpop.f32.mrf.mxu0
  %v418 = vadd.f32 0.0, %v417
  %v419 = vpop.f32.mrf.mxu0
  %v420 = vpop.f32.mrf.mxu0
  %v421 = vadd.f32 0.0, %v420
  %v422 = vpop.f32.mrf.mxu0
  %423 = vmatprep.mubr.bf16.mxu0 0
  %424 = vmatmul.mubr.bf16.gmra.mxu0 %v237
  %v425 = vpop.f32.mrf.mxu0
  %v426 = vadd.f32 0.0, %v425
  %v427 = vpop.f32.mrf.mxu0
  %v428 = vpop.f32.mrf.mxu0
  %v429 = vadd.f32 0.0, %v428
  %v430 = vpop.f32.mrf.mxu0
  %431 = vmatprep.mubr.bf16.mxu0 0
  %432 = vmatmul.mubr.bf16.gmra.mxu0 %v238
  %v433 = vpop.f32.mrf.mxu0
  %v434 = vadd.f32 0.0, %v433
  %v435 = vpop.f32.mrf.mxu0
  %v436 = vpop.f32.mrf.mxu0
  %v437 = vadd.f32 0.0, %v436
  %v438 = vpop.f32.mrf.mxu0
  %439 = vmatprep.mubr.bf16.mxu0 0
  %440 = vmatmul.mubr.bf16.gmra.mxu0 %v239
  %v441 = vpop.f32.mrf.mxu0
  %v442 = vadd.f32 0.0, %v441
  %v443 = vpop.f32.mrf.mxu0
  %v444 = vpop.f32.mrf.mxu0
  %v445 = vadd.f32 0.0, %v444
  %v446 = vpop.f32.mrf.mxu0
  %447 = vmatprep.mubr.bf16.mxu0 0
  %448 = vmatmul.mubr.bf16.gmra.mxu0 %v240
  %v449 = vpop.f32.mrf.mxu0
  %v450 = vadd.f32 0.0, %v449
  %v451 = vpop.f32.mrf.mxu0
  %v452 = vpop.f32.mrf.mxu0
  %v453 = vadd.f32 0.0, %v452
  %v454 = vpop.f32.mrf.mxu0
  %455 = vmatprep.mubr.bf16.mxu0 0
  %456 = vmatmul.mubr.bf16.gmra.mxu0 %v241
  %v457 = vpop.f32.mrf.mxu0
  %v458 = vadd.f32 0.0, %v457
  %v459 = vpop.f32.mrf.mxu0
  %v460 = vpop.f32.mrf.mxu0
  %v461 = vadd.f32 0.0, %v460
  %v462 = vpop.f32.mrf.mxu0
  %463 = vmatprep.mubr.bf16.mxu0 0
  %464 = vmatmul.mubr.bf16.gmra.mxu0 %v242
  %v465 = vpop.f32.mrf.mxu0
  %v466 = vadd.f32 0.0, %v465
  %v467 = vpop.f32.mrf.mxu0
  %v468 = vpop.f32.mrf.mxu0
  %v469 = vadd.f32 0.0, %v468
  %v470 = vpop.f32.mrf.mxu0
  %471 = vmatprep.mubr.bf16.mxu0 0
  %472 = vmatmul.mubr.bf16.gmra.mxu0 %v243
  %v473 = vpop.f32.mrf.mxu0
  %v474 = vadd.f32 0.0, %v473
  %v475 = vpop.f32.mrf.mxu0
  %v476 = vpop.f32.mrf.mxu0
  %v477 = vadd.f32 0.0, %v476
  %v478 = vpop.f32.mrf.mxu0
  %479 = vmatprep.mubr.bf16.mxu0 0
  %480 = vmatmul.mubr.bf16.gmra.mxu0 %v244
  %v481 = vpop.f32.mrf.mxu0
  %v482 = vadd.f32 0.0, %v481
  %v483 = vpop.f32.mrf.mxu0
  %v484 = vpop.f32.mrf.mxu0
  %v485 = vadd.f32 0.0, %v484
  %v486 = vpop.f32.mrf.mxu0
  %487 = vmatprep.mubr.bf16.mxu0 0
  %488 = vmatmul.mubr.bf16.gmra.mxu0 %v245
  %v489 = vpop.f32.mrf.mxu0
  %v490 = vadd.f32 0.0, %v489
  %v491 = vpop.f32.mrf.mxu0
  %v492 = vpop.f32.mrf.mxu0
  %v493 = vadd.f32 0.0, %v492
  %v494 = vpop.f32.mrf.mxu0
  %495 = vmatprep.mubr.bf16.mxu0 0
  %496 = vmatmul.mubr.bf16.gmra.mxu0 %v246
  %v497 = vpop.f32.mrf.mxu0
  %v498 = vadd.f32 0.0, %v497
  %v499 = vpop.f32.mrf.mxu0
  %v500 = vpop.f32.mrf.mxu0
  %v501 = vadd.f32 0.0, %v500
  %v502 = vpop.f32.mrf.mxu0
  %503 = vmatprep.mubr.bf16.mxu0 0
  %504 = vmatmul.mubr.bf16.gmra.mxu0 %v247
  %v505 = vpop.f32.mrf.mxu0
  %v506 = vadd.f32 0.0, %v505
  %v507 = vpop.f32.mrf.mxu0
  %v508 = vpop.f32.mrf.mxu0
  %v509 = vadd.f32 0.0, %v508
  %v510 = vpop.f32.mrf.mxu0
  %511 = vmatprep.mubr.bf16.mxu0 0
  %512 = vmatmul.mubr.bf16.gmra.mxu0 %v248
  %v513 = vpop.f32.mrf.mxu0
  %v514 = vadd.f32 0.0, %v513
  %v515 = vpop.f32.mrf.mxu0
  %v516 = vpop.f32.mrf.mxu0
  %v517 = vadd.f32 0.0, %v516
  %v518 = vpop.f32.mrf.mxu0
  %519 = vmatprep.mubr.bf16.mxu0 0
  %520 = vmatmul.mubr.bf16.gmra.mxu0 %v249
  %v521 = vpop.f32.mrf.mxu0
  %v522 = vadd.f32 0.0, %v521
  %v523 = vpop.f32.mrf.mxu0
  %v524 = vpop.f32.mrf.mxu0
  %v525 = vadd.f32 0.0, %v524
  %v526 = vpop.f32.mrf.mxu0
  %527 = vmatprep.mubr.bf16.mxu0 0
  %528 = vmatmul.mubr.bf16.gmra.mxu0 %v250
  %v529 = vpop.f32.mrf.mxu0
  %v530 = vadd.f32 0.0, %v529
  %v531 = vpop.f32.mrf.mxu0
  %v532 = vpop.f32.mrf.mxu0
  %v533 = vadd.f32 0.0, %v532
  %v534 = vpop.f32.mrf.mxu0
  %535 = vmatprep.mubr.bf16.mxu0 0
  %536 = vmatmul.mubr.bf16.gmra.mxu0 %v251
  %v537 = vpop.f32.mrf.mxu0
  %v538 = vadd.f32 0.0, %v537
  %v539 = vpop.f32.mrf.mxu0
  %v540 = vpop.f32.mrf.mxu0
  %v541 = vadd.f32 0.0, %v540
  %v542 = vpop.f32.mrf.mxu0
  %543 = vmatprep.mubr.bf16.mxu0 0
  %544 = vmatmul.mubr.bf16.gmra.mxu0 %v252
  %v545 = vpop.f32.mrf.mxu0
  %v546 = vadd.f32 0.0, %v545
  %v547 = vpop.f32.mrf.mxu0
  %v548 = vpop.f32.mrf.mxu0
  %v549 = vadd.f32 0.0, %v548
  %v550 = vpop.f32.mrf.mxu0
  %551 = vmatprep.mubr.bf16.mxu0 0
  %552 = vmatmul.mubr.bf16.gmra.mxu0 %v253
  %v553 = vpop.f32.mrf.mxu0
  %v554 = vadd.f32 0.0, %v553
  %v555 = vpop.f32.mrf.mxu0
  %v556 = vpop.f32.mrf.mxu0
  %v557 = vadd.f32 0.0, %v556
  %v558 = vpop.f32.mrf.mxu0
  %559 = vmatprep.mubr.bf16.mxu0 0
  %560 = vmatmul.mubr.bf16.gmra.mxu0 %v254
  %v561 = vpop.f32.mrf.mxu0
  %v562 = vadd.f32 0.0, %v561
  %v563 = vpop.f32.mrf.mxu0
  %v564 = vpop.f32.mrf.mxu0
  %v565 = vadd.f32 0.0, %v564
  %v566 = vpop.f32.mrf.mxu0
  %567 = vmatprep.mubr.bf16.mxu0 0
  %568 = vmatmul.mubr.bf16.gmra.mxu0 %v255
  %v569 = vpop.f32.mrf.mxu0
  %v570 = vadd.f32 0.0, %v569
  %v571 = vpop.f32.mrf.mxu0
  %v572 = vpop.f32.mrf.mxu0
  %v573 = vadd.f32 0.0, %v572
  %v574 = vpop.f32.mrf.mxu0
  %575 = vmatprep.mubr.bf16.mxu0 0
  %576 = vmatmul.mubr.bf16.gmra.mxu0 %v256
  %v577 = vpop.f32.mrf.mxu0
  %v578 = vadd.f32 0.0, %v577
  %v579 = vpop.f32.mrf.mxu0
  %v580 = vpop.f32.mrf.mxu0
  %v581 = vadd.f32 0.0, %v580
  %v582 = vpop.f32.mrf.mxu0
  %583 = vmatprep.mubr.bf16.mxu0 0
  %584 = vmatmul.mubr.bf16.gmra.mxu0 %v257
  %v585 = vpop.f32.mrf.mxu0
  %v586 = vadd.f32 0.0, %v585
  %v587 = vpop.f32.mrf.mxu0
  %v588 = vpop.f32.mrf.mxu0
  %v589 = vadd.f32 0.0, %v588
  %v590 = vpop.f32.mrf.mxu0
  %591 = vmatprep.mubr.bf16.mxu0 0
  %592 = vmatmul.mubr.bf16.gmra.mxu0 %v258
  %v593 = vpop.f32.mrf.mxu0
  %v594 = vadd.f32 0.0, %v593
  %v595 = vpop.f32.mrf.mxu0
  %v596 = vpop.f32.mrf.mxu0
  %v597 = vadd.f32 0.0, %v596
  %v598 = vpop.f32.mrf.mxu0
  %599 = vmatprep.mubr.bf16.mxu0 0
  %600 = vmatmul.mubr.bf16.gmra.mxu0 %v259
  %v601 = vpop.f32.mrf.mxu0
  %v602 = vadd.f32 0.0, %v601
  %v603 = vpop.f32.mrf.mxu0
  %v604 = vpop.f32.mrf.mxu0
  %v605 = vadd.f32 0.0, %v604
  %v606 = vpop.f32.mrf.mxu0
  %607 = vmatprep.mubr.bf16.mxu0 0
  %608 = vmatmul.mubr.bf16.gmra.mxu0 %v260
  %v609 = vpop.f32.mrf.mxu0
  %v610 = vadd.f32 0.0, %v609
  %v611 = vpop.f32.mrf.mxu0
  %v612 = vpop.f32.mrf.mxu0
  %v613 = vadd.f32 0.0, %v612
  %v614 = vpop.f32.mrf.mxu0
  %615 = vmatprep.mubr.bf16.mxu0 0
  %616 = vmatmul.mubr.bf16.gmra.mxu0 %v261
  %v617 = vpop.f32.mrf.mxu0
  %v618 = vadd.f32 0.0, %v617
  %v619 = vpop.f32.mrf.mxu0
  %v620 = vpop.f32.mrf.mxu0
  %v621 = vadd.f32 0.0, %v620
  %v622 = vpop.f32.mrf.mxu0
  %623 = vmatprep.mubr.bf16.mxu0 0
  %624 = vmatmul.mubr.bf16.gmra.mxu0 %v262
  %v625 = vpop.f32.mrf.mxu0
  %v626 = vadd.f32 0.0, %v625
  %v627 = vpop.f32.mrf.mxu0
  %v628 = vpop.f32.mrf.mxu0
  %v629 = vadd.f32 0.0, %v628
  %v630 = vpop.f32.mrf.mxu0
  %631 = vdwg.mxu0
  %v632 = vmax.f32 %v378, %v442
  %v633 = vmax.f32 %v381, %v445
  %v634 = vmax.f32 %v386, %v450
  %v635 = vmax.f32 %v389, %v453
  %v636 = vmax.f32 %v394, %v458
  %v637 = vmax.f32 %v397, %v461
  %v638 = vmax.f32 %v402, %v466
  %v639 = vmax.f32 %v405, %v469
  %v640 = vmax.f32 %v410, %v474
  %v641 = vmax.f32 %v413, %v477
  %v642 = vmax.f32 %v418, %v482
  %v643 = vmax.f32 %v421, %v485
  %v644 = vmax.f32 %v426, %v490
  %v645 = vmax.f32 %v429, %v493
  %v646 = vmax.f32 %v434, %v498
  %v647 = vmax.f32 %v437, %v501
  %v648 = vmax.f32 %v506, %v570
  %v649 = vmax.f32 %v509, %v573
  %v650 = vmax.f32 %v514, %v578
  %v651 = vmax.f32 %v517, %v581
  %v652 = vmax.f32 %v522, %v586
  %v653 = vmax.f32 %v525, %v589
  %v654 = vmax.f32 %v530, %v594
  %v655 = vmax.f32 %v533, %v597
  %v656 = vmax.f32 %v538, %v602
  %v657 = vmax.f32 %v541, %v605
  %v658 = vmax.f32 %v546, %v610
  %v659 = vmax.f32 %v549, %v613
  %v660 = vmax.f32 %v554, %v618
  %v661 = vmax.f32 %v557, %v621
  %v662 = vmax.f32 %v562, %v626
  %v663 = vmax.f32 %v565, %v629
  %v664 = vmax.f32 %v632, %v648
  %v665 = vmax.f32 %v633, %v649
  %v666 = vmax.f32 %v634, %v650
  %v667 = vmax.f32 %v635, %v651
  %v668 = vmax.f32 %v636, %v652
  %v669 = vmax.f32 %v637, %v653
  %v670 = vmax.f32 %v638, %v654
  %v671 = vmax.f32 %v639, %v655
  %v672 = vmax.f32 %v640, %v656
  %v673 = vmax.f32 %v641, %v657
  %v674 = vmax.f32 %v642, %v658
  %v675 = vmax.f32 %v643, %v659
  %v676 = vmax.f32 %v644, %v660
  %v677 = vmax.f32 %v645, %v661
  %v678 = vmax.f32 %v646, %v662
  %v679 = vmax.f32 %v647, %v663
  %v680 = vld [vmem:[%s2] sm:$0x1]
  %v682 = vlaneseq
  %v683 = vshrl.u32 %v682, 7
  %v684 = vsub.s32 0, %v683
  %v685 = vrot.slane %v680, %v684
  %v687 = vadd.f32 %v664, %v685
  %v688 = vadd.f32 %v665, %v685
  %v689 = vadd.f32 %v666, %v685
  %v690 = vadd.f32 %v667, %v685
  %v691 = vadd.f32 %v668, %v685
  %v692 = vadd.f32 %v669, %v685
  %v693 = vadd.f32 %v670, %v685
  %v694 = vadd.f32 %v671, %v685
  %v695 = vadd.f32 %v672, %v685
  %v696 = vadd.f32 %v673, %v685
  %v697 = vadd.f32 %v674, %v685
  %v698 = vadd.f32 %v675, %v685
  %v699 = vadd.f32 %v676, %v685
  %v700 = vadd.f32 %v677, %v685
  %v701 = vadd.f32 %v678, %v685
  %v702 = vadd.f32 %v679, %v685
  %v703 = vmax.f32 %v687, 0.0
  %v704 = vmax.f32 %v688, 0.0
  %v705 = vmax.f32 %v689, 0.0
  %v706 = vmax.f32 %v690, 0.0
  %v707 = vmax.f32 %v691, 0.0
  %v708 = vmax.f32 %v692, 0.0
  %v709 = vmax.f32 %v693, 0.0
  %v710 = vmax.f32 %v694, 0.0
  %v711 = vmax.f32 %v695, 0.0
  %v712 = vmax.f32 %v696, 0.0
  %v713 = vmax.f32 %v697, 0.0
  %v714 = vmax.f32 %v698, 0.0
  %v715 = vmax.f32 %v699, 0.0
  %v716 = vmax.f32 %v700, 0.0
  %v717 = vmax.f32 %v701, 0.0
  %v718 = vmax.f32 %v702, 0.0
  %v719 = vpack.c.bf16 %v704, %v703
  %v720 = vpack.c.bf16 %v706, %v705
  %v721 = vpack.c.bf16 %v708, %v707
  %v722 = vpack.c.bf16 %v710, %v709
  %v723 = vpack.c.bf16 %v712, %v711
  %v724 = vpack.c.bf16 %v714, %v713
  %v725 = vpack.c.bf16 %v716, %v715
  %v726 = vpack.c.bf16 %v718, %v717
  %v735 = vunpack.c.l.b16 %v719
  %v736 = vunpack.c.h.b16 %v719
  %v737 = vunpack.c.l.b16 %v720
  %v738 = vunpack.c.h.b16 %v720
  %v739 = vunpack.c.l.b16 %v721
  %v740 = vunpack.c.h.b16 %v721
  %v741 = vunpack.c.l.b16 %v722
  %v742 = vunpack.c.h.b16 %v722
  %v743 = vunpack.c.l.b16 %v723
  %v744 = vunpack.c.h.b16 %v723
  %v745 = vunpack.c.l.b16 %v724
  %v746 = vunpack.c.h.b16 %v724
  %v747 = vunpack.c.l.b16 %v725
  %v748 = vunpack.c.h.b16 %v725
  %v749 = vunpack.c.l.b16 %v726
  %v750 = vunpack.c.h.b16 %v726
  %v751 = vpack.c.b16 %v735, %v735
  %v752 = vpack.c.b16 %v736, %v736
  %v753 = vpack.c.b16 %v737, %v737
  %v754 = vpack.c.b16 %v738, %v738
  %v755 = vpack.c.b16 %v739, %v739
  %v756 = vpack.c.b16 %v740, %v740
  %v757 = vpack.c.b16 %v741, %v741
  %v758 = vpack.c.b16 %v742, %v742
  %v759 = vpack.c.b16 %v743, %v743
  %v760 = vpack.c.b16 %v744, %v744
  %v761 = vpack.c.b16 %v745, %v745
  %v762 = vpack.c.b16 %v746, %v746
  %v763 = vpack.c.b16 %v747, %v747
  %v764 = vpack.c.b16 %v748, %v748
  %v765 = vpack.c.b16 %v749, %v749
  %v766 = vpack.c.b16 %v750, %v750
  %783 = vst [vmem:[%s5] sm:$0xf] %v751
  %784 = vst [vmem:[%s5 + $0x4] sm:$0xf] %v752
  %785 = vst [vmem:[%s5 + $0x8] sm:$0xf] %v753
  %786 = vst [vmem:[%s5 + $0xc] sm:$0xf] %v754
  %787 = vst [vmem:[%s5 + $0x10] sm:$0xf] %v755
  %788 = vst [vmem:[%s5 + $0x14] sm:$0xf] %v756
  %789 = vst [vmem:[%s5 + $0x18] sm:$0xf] %v757
  %790 = vst [vmem:[%s5 + $0x1c] sm:$0xf] %v758
  %791 = vst [vmem:[%s5 + $0x20] sm:$0xf] %v759
  %792 = vst [vmem:[%s5 + $0x24] sm:$0xf] %v760
  %793 = vst [vmem:[%s5 + $0x28] sm:$0xf] %v761
  %794 = vst [vmem:[%s5 + $0x2c] sm:$0xf] %v762
  %795 = vst [vmem:[%s5 + $0x30] sm:$0xf] %v763
  %796 = vst [vmem:[%s5 + $0x34] sm:$0xf] %v764
  %797 = vst [vmem:[%s5 + $0x38] sm:$0xf] %v765
  %798 = vst [vmem:[%s5 + $0x3c] sm:$0xf] %v766
  %v799 = vlaneseq
  %v800 = vshrl.u32 %v799, 7
  %v801 = vadd.s32 %v800, 8
  %v802 = vadd.s32 %v800, 16
  %v803 = vadd.s32 %v800, 24
  %v804 = vadd.s32 %v800, 32
  %v805 = vadd.s32 %v800, 40
  %v806 = vadd.s32 %v800, 48
  %v807 = vadd.s32 %v800, 56
  %v808 = vadd.s32 %v800, 64
  %v809 = vadd.s32 %v800, 72
  %v810 = vadd.s32 %v800, 80
  %v811 = vadd.s32 %v800, 88
  %v812 = vadd.s32 %v800, 96
  %v813 = vadd.s32 %v800, 104
  %v814 = vadd.s32 %v800, 112
  %v815 = vadd.s32 %v800, 120
  %v816 = vand.u32 %v800, 7
  %v817 = vand.u32 %v801, 7
  %v818 = vand.u32 %v802, 7
  %v819 = vand.u32 %v803, 7
  %v820 = vand.u32 %v804, 7
  %v821 = vand.u32 %v805, 7
  %v822 = vand.u32 %v806, 7
  %v823 = vand.u32 %v807, 7
  %v824 = vand.u32 %v808, 7
  %v825 = vand.u32 %v809, 7
  %v826 = vand.u32 %v810, 7
  %v827 = vand.u32 %v811, 7
  %v828 = vand.u32 %v812, 7
  %v829 = vand.u32 %v813, 7
  %v830 = vand.u32 %v814, 7
  %v831 = vand.u32 %v815, 7
  %v832 = vshra.s32 %v800, 3
  %v833 = vshra.s32 %v801, 3
  %v834 = vshra.s32 %v802, 3
  %v835 = vshra.s32 %v803, 3
  %v836 = vshra.s32 %v804, 3
  %v837 = vshra.s32 %v805, 3
  %v838 = vshra.s32 %v806, 3
  %v839 = vshra.s32 %v807, 3
  %v840 = vshra.s32 %v808, 3
  %v841 = vshra.s32 %v809, 3
  %v842 = vshra.s32 %v810, 3
  %v843 = vshra.s32 %v811, 3
  %v844 = vshra.s32 %v812, 3
  %v845 = vshra.s32 %v813, 3
  %v846 = vshra.s32 %v814, 3
  %v847 = vshra.s32 %v815, 3
  %v848 = vand.u32 %v832, 7
  %v849 = vand.u32 %v833, 7
  %v850 = vand.u32 %v834, 7
  %v851 = vand.u32 %v835, 7
  %v852 = vand.u32 %v836, 7
  %v853 = vand.u32 %v837, 7
  %v854 = vand.u32 %v838, 7
  %v855 = vand.u32 %v839, 7
  %v856 = vand.u32 %v840, 7
  %v857 = vand.u32 %v841, 7
  %v858 = vand.u32 %v842, 7
  %v859 = vand.u32 %v843, 7
  %v860 = vand.u32 %v844, 7
  %v861 = vand.u32 %v845, 7
  %v862 = vand.u32 %v846, 7
  %v863 = vand.u32 %v847, 7
  %v864 = vrot.slane %v703, 7
  %v865 = vrot.slane %v704, 7
  %v866 = vrot.slane %v705, 7
  %v867 = vrot.slane %v706, 7
  %v868 = vrot.slane %v707, 7
  %v869 = vrot.slane %v708, 7
  %v870 = vrot.slane %v709, 7
  %v871 = vrot.slane %v710, 7
  %v872 = vrot.slane %v711, 7
  %v873 = vrot.slane %v712, 7
  %v874 = vrot.slane %v713, 7
  %v875 = vrot.slane %v714, 7
  %v876 = vrot.slane %v715, 7
  %v877 = vrot.slane %v716, 7
  %v878 = vrot.slane %v717, 7
  %v879 = vrot.slane %v718, 7
  %vm880 = vcmp.lt.s32.totalorder %v800, 1
  %v881 = vsel %vm880, %v878, %v879
  %v882 = vsel %vm880, %v877, %v878
  %v883 = vsel %vm880, %v876, %v877
  %v884 = vsel %vm880, %v875, %v876
  %v885 = vsel %vm880, %v874, %v875
  %v886 = vsel %vm880, %v873, %v874
  %v887 = vsel %vm880, %v872, %v873
  %v888 = vsel %vm880, %v871, %v872
  %v889 = vsel %vm880, %v870, %v871
  %v890 = vsel %vm880, %v869, %v870
  %v891 = vsel %vm880, %v868, %v869
  %v892 = vsel %vm880, %v867, %v868
  %v893 = vsel %vm880, %v866, %v867
  %v894 = vsel %vm880, %v865, %v866
  %v895 = vsel %vm880, %v864, %v865
  %v896 = vsel %vm880, %v879, %v864
  %vm897 = vcmp.ge.s32.totalorder %v848, 1
  %vm898 = vcmp.ge.s32.totalorder %v849, 1
  %vm899 = vcmp.ge.s32.totalorder %v850, 1
  %vm900 = vcmp.ge.s32.totalorder %v851, 1
  %vm901 = vcmp.ge.s32.totalorder %v852, 1
  %vm902 = vcmp.ge.s32.totalorder %v853, 1
  %vm903 = vcmp.ge.s32.totalorder %v854, 1
  %vm904 = vcmp.ge.s32.totalorder %v855, 1
  %vm905 = vcmp.ge.s32.totalorder %v856, 1
  %vm906 = vcmp.ge.s32.totalorder %v857, 1
  %vm907 = vcmp.ge.s32.totalorder %v858, 1
  %vm908 = vcmp.ge.s32.totalorder %v859, 1
  %vm909 = vcmp.ge.s32.totalorder %v860, 1
  %vm910 = vcmp.ge.s32.totalorder %v861, 1
  %vm911 = vcmp.ge.s32.totalorder %v862, 1
  %vm912 = vcmp.ge.s32.totalorder %v863, 1
  %vm913 = vcmp.ge.s32.totalorder %v816, 1
  %vm914 = vcmp.ge.s32.totalorder %v817, 1
  %vm915 = vcmp.ge.s32.totalorder %v818, 1
  %vm916 = vcmp.ge.s32.totalorder %v819, 1
  %vm917 = vcmp.ge.s32.totalorder %v820, 1
  %vm918 = vcmp.ge.s32.totalorder %v821, 1
  %vm919 = vcmp.ge.s32.totalorder %v822, 1
  %vm920 = vcmp.ge.s32.totalorder %v823, 1
  %vm921 = vcmp.ge.s32.totalorder %v824, 1
  %vm922 = vcmp.ge.s32.totalorder %v825, 1
  %vm923 = vcmp.ge.s32.totalorder %v826, 1
  %vm924 = vcmp.ge.s32.totalorder %v827, 1
  %vm925 = vcmp.ge.s32.totalorder %v828, 1
  %vm926 = vcmp.ge.s32.totalorder %v829, 1
  %vm927 = vcmp.ge.s32.totalorder %v830, 1
  %vm928 = vcmp.ge.s32.totalorder %v831, 1
  %vm929 = vmand %vm897, %vm913
  %vm930 = vmand %vm898, %vm914
  %vm931 = vmand %vm899, %vm915
  %vm932 = vmand %vm900, %vm916
  %vm933 = vmand %vm901, %vm917
  %vm934 = vmand %vm902, %vm918
  %vm935 = vmand %vm903, %vm919
  %vm936 = vmand %vm904, %vm920
  %vm937 = vmand %vm905, %vm921
  %vm938 = vmand %vm906, %vm922
  %vm939 = vmand %vm907, %vm923
  %vm940 = vmand %vm908, %vm924
  %vm941 = vmand %vm909, %vm925
  %vm942 = vmand %vm910, %vm926
  %vm943 = vmand %vm911, %vm927
  %vm944 = vmand %vm912, %vm928
  %v945 = vsel %vm929, %v881, 0.0
  %v946 = vsel %vm930, %v896, 0.0
  %v947 = vsel %vm931, %v895, 0.0
  %v948 = vsel %vm932, %v894, 0.0
  %v949 = vsel %vm933, %v893, 0.0
  %v950 = vsel %vm934, %v892, 0.0
  %v951 = vsel %vm935, %v891, 0.0
  %v952 = vsel %vm936, %v890, 0.0
  %v953 = vsel %vm937, %v889, 0.0
  %v954 = vsel %vm938, %v888, 0.0
  %v955 = vsel %vm939, %v887, 0.0
  %v956 = vsel %vm940, %v886, 0.0
  %v957 = vsel %vm941, %v885, 0.0
  %v958 = vsel %vm942, %v884, 0.0
  %v959 = vsel %vm943, %v883, 0.0
  %v960 = vsel %vm944, %v882, 0.0
  %v961 = vsel %vm897, %v718, 0.0
  %v962 = vsel %vm898, %v703, 0.0
  %v963 = vsel %vm899, %v704, 0.0
  %v964 = vsel %vm900, %v705, 0.0
  %v965 = vsel %vm901, %v706, 0.0
  %v966 = vsel %vm902, %v707, 0.0
  %v967 = vsel %vm903, %v708, 0.0
  %v968 = vsel %vm904, %v709, 0.0
  %v969 = vsel %vm905, %v710, 0.0
  %v970 = vsel %vm906, %v711, 0.0
  %v971 = vsel %vm907, %v712, 0.0
  %v972 = vsel %vm908, %v713, 0.0
  %v973 = vsel %vm909, %v714, 0.0
  %v974 = vsel %vm910, %v715, 0.0
  %v975 = vsel %vm911, %v716, 0.0
  %v976 = vsel %vm912, %v717, 0.0
  %977 = vrot.lane.b32.xlu0 %v961, 8
  %v978 = vpop.permute.xlu0 %977
  %979 = vrot.lane.b32.xlu0 %v962, 8
  %v980 = vpop.permute.xlu0 %979
  %981 = vrot.lane.b32.xlu0 %v963, 8
  %v982 = vpop.permute.xlu0 %981
  %983 = vrot.lane.b32.xlu0 %v964, 8
  %v984 = vpop.permute.xlu0 %983
  %985 = vrot.lane.b32.xlu0 %v965, 8
  %v986 = vpop.permute.xlu0 %985
  %987 = vrot.lane.b32.xlu0 %v966, 8
  %v988 = vpop.permute.xlu0 %987
  %989 = vrot.lane.b32.xlu0 %v967, 8
  %v990 = vpop.permute.xlu0 %989
  %991 = vrot.lane.b32.xlu0 %v968, 8
  %v992 = vpop.permute.xlu0 %991
  %993 = vrot.lane.b32.xlu0 %v969, 8
  %v994 = vpop.permute.xlu0 %993
  %995 = vrot.lane.b32.xlu0 %v970, 8
  %v996 = vpop.permute.xlu0 %995
  %997 = vrot.lane.b32.xlu0 %v971, 8
  %v998 = vpop.permute.xlu0 %997
  %999 = vrot.lane.b32.xlu0 %v972, 8
  %v1000 = vpop.permute.xlu0 %999
  %1001 = vrot.lane.b32.xlu0 %v973, 8
  %v1002 = vpop.permute.xlu0 %1001
  %1003 = vrot.lane.b32.xlu0 %v974, 8
  %v1004 = vpop.permute.xlu0 %1003
  %1005 = vrot.lane.b32.xlu0 %v975, 8
  %v1006 = vpop.permute.xlu0 %1005
  %1007 = vrot.lane.b32.xlu0 %v976, 8
  %v1008 = vpop.permute.xlu0 %1007
  %v1009 = vadd.f32 %v945, %v978
  %v1010 = vadd.f32 %v946, %v980
  %v1011 = vadd.f32 %v947, %v982
  %v1012 = vadd.f32 %v948, %v984
  %v1013 = vadd.f32 %v949, %v986
  %v1014 = vadd.f32 %v950, %v988
  %v1015 = vadd.f32 %v951, %v990
  %v1016 = vadd.f32 %v952, %v992
  %v1017 = vadd.f32 %v953, %v994
  %v1018 = vadd.f32 %v954, %v996
  %v1019 = vadd.f32 %v955, %v998
  %v1020 = vadd.f32 %v956, %v1000
  %v1021 = vadd.f32 %v957, %v1002
  %v1022 = vadd.f32 %v958, %v1004
  %v1023 = vadd.f32 %v959, %v1006
  %v1024 = vadd.f32 %v960, %v1008
  %v1025 = vrot.slane %v703, 1
  %v1026 = vrot.slane %v704, 1
  %v1027 = vrot.slane %v705, 1
  %v1028 = vrot.slane %v706, 1
  %v1029 = vrot.slane %v707, 1
  %v1030 = vrot.slane %v708, 1
  %v1031 = vrot.slane %v709, 1
  %v1032 = vrot.slane %v710, 1
  %v1033 = vrot.slane %v711, 1
  %v1034 = vrot.slane %v712, 1
  %v1035 = vrot.slane %v713, 1
  %v1036 = vrot.slane %v714, 1
  %v1037 = vrot.slane %v715, 1
  %v1038 = vrot.slane %v716, 1
  %v1039 = vrot.slane %v717, 1
  %v1040 = vrot.slane %v718, 1
  %vm1041 = vcmp.lt.s32.totalorder %v800, 7
  %v1042 = vsel %vm1041, %v1039, %v1040
  %v1043 = vsel %vm1041, %v1038, %v1039
  %v1044 = vsel %vm1041, %v1037, %v1038
  %v1045 = vsel %vm1041, %v1036, %v1037
  %v1046 = vsel %vm1041, %v1035, %v1036
  %v1047 = vsel %vm1041, %v1034, %v1035
  %v1048 = vsel %vm1041, %v1033, %v1034
  %v1049 = vsel %vm1041, %v1032, %v1033
  %v1050 = vsel %vm1041, %v1031, %v1032
  %v1051 = vsel %vm1041, %v1030, %v1031
  %v1052 = vsel %vm1041, %v1029, %v1030
  %v1053 = vsel %vm1041, %v1028, %v1029
  %v1054 = vsel %vm1041, %v1027, %v1028
  %v1055 = vsel %vm1041, %v1026, %v1027
  %v1056 = vsel %vm1041, %v1025, %v1026
  %v1057 = vsel %vm1041, %v1040, %v1025
  %vm1058 = vcmp.lt.s32.totalorder %v816, 7
  %vm1059 = vcmp.lt.s32.totalorder %v817, 7
  %vm1060 = vcmp.lt.s32.totalorder %v818, 7
  %vm1061 = vcmp.lt.s32.totalorder %v819, 7
  %vm1062 = vcmp.lt.s32.totalorder %v820, 7
  %vm1063 = vcmp.lt.s32.totalorder %v821, 7
  %vm1064 = vcmp.lt.s32.totalorder %v822, 7
  %vm1065 = vcmp.lt.s32.totalorder %v823, 7
  %vm1066 = vcmp.lt.s32.totalorder %v824, 7
  %vm1067 = vcmp.lt.s32.totalorder %v825, 7
  %vm1068 = vcmp.lt.s32.totalorder %v826, 7
  %vm1069 = vcmp.lt.s32.totalorder %v827, 7
  %vm1070 = vcmp.lt.s32.totalorder %v828, 7
  %vm1071 = vcmp.lt.s32.totalorder %v829, 7
  %vm1072 = vcmp.lt.s32.totalorder %v830, 7
  %vm1073 = vcmp.lt.s32.totalorder %v831, 7
  %vm1074 = vmand %vm897, %vm1058
  %vm1075 = vmand %vm898, %vm1059
  %vm1076 = vmand %vm899, %vm1060
  %vm1077 = vmand %vm900, %vm1061
  %vm1078 = vmand %vm901, %vm1062
  %vm1079 = vmand %vm902, %vm1063
  %vm1080 = vmand %vm903, %vm1064
  %vm1081 = vmand %vm904, %vm1065
  %vm1082 = vmand %vm905, %vm1066
  %vm1083 = vmand %vm906, %vm1067
  %vm1084 = vmand %vm907, %vm1068
  %vm1085 = vmand %vm908, %vm1069
  %vm1086 = vmand %vm909, %vm1070
  %vm1087 = vmand %vm910, %vm1071
  %vm1088 = vmand %vm911, %vm1072
  %vm1089 = vmand %vm912, %vm1073
  %v1090 = vsel %vm1074, %v1057, 0.0
  %v1091 = vsel %vm1075, %v1056, 0.0
  %v1092 = vsel %vm1076, %v1055, 0.0
  %v1093 = vsel %vm1077, %v1054, 0.0
  %v1094 = vsel %vm1078, %v1053, 0.0
  %v1095 = vsel %vm1079, %v1052, 0.0
  %v1096 = vsel %vm1080, %v1051, 0.0
  %v1097 = vsel %vm1081, %v1050, 0.0
  %v1098 = vsel %vm1082, %v1049, 0.0
  %v1099 = vsel %vm1083, %v1048, 0.0
  %v1100 = vsel %vm1084, %v1047, 0.0
  %v1101 = vsel %vm1085, %v1046, 0.0
  %v1102 = vsel %vm1086, %v1045, 0.0
  %v1103 = vsel %vm1087, %v1044, 0.0
  %v1104 = vsel %vm1088, %v1043, 0.0
  %v1105 = vsel %vm1089, %v1042, 0.0
  %1106 = vrot.lane.b32.xlu0 %v1090, 16
  %v1107 = vpop.permute.xlu0 %1106
  %1108 = vrot.lane.b32.xlu0 %v1091, 16
  %v1109 = vpop.permute.xlu0 %1108
  %1110 = vrot.lane.b32.xlu0 %v1092, 16
  %v1111 = vpop.permute.xlu0 %1110
  %1112 = vrot.lane.b32.xlu0 %v1093, 16
  %v1113 = vpop.permute.xlu0 %1112
  %1114 = vrot.lane.b32.xlu0 %v1094, 16
  %v1115 = vpop.permute.xlu0 %1114
  %1116 = vrot.lane.b32.xlu0 %v1095, 16
  %v1117 = vpop.permute.xlu0 %1116
  %1118 = vrot.lane.b32.xlu0 %v1096, 16
  %v1119 = vpop.permute.xlu0 %1118
  %1120 = vrot.lane.b32.xlu0 %v1097, 16
  %v1121 = vpop.permute.xlu0 %1120
  %1122 = vrot.lane.b32.xlu0 %v1098, 16
  %v1123 = vpop.permute.xlu0 %1122
  %1124 = vrot.lane.b32.xlu0 %v1099, 16
  %v1125 = vpop.permute.xlu0 %1124
  %1126 = vrot.lane.b32.xlu0 %v1100, 16
  %v1127 = vpop.permute.xlu0 %1126
  %1128 = vrot.lane.b32.xlu0 %v1101, 16
  %v1129 = vpop.permute.xlu0 %1128
  %1130 = vrot.lane.b32.xlu0 %v1102, 16
  %v1131 = vpop.permute.xlu0 %1130
  %1132 = vrot.lane.b32.xlu0 %v1103, 16
  %v1133 = vpop.permute.xlu0 %1132
  %1134 = vrot.lane.b32.xlu0 %v1104, 16
  %v1135 = vpop.permute.xlu0 %1134
  %1136 = vrot.lane.b32.xlu0 %v1105, 16
  %v1137 = vpop.permute.xlu0 %1136
  %v1138 = vadd.f32 %v1009, %v1107
  %v1139 = vadd.f32 %v1010, %v1109
  %v1140 = vadd.f32 %v1011, %v1111
  %v1141 = vadd.f32 %v1012, %v1113
  %v1142 = vadd.f32 %v1013, %v1115
  %v1143 = vadd.f32 %v1014, %v1117
  %v1144 = vadd.f32 %v1015, %v1119
  %v1145 = vadd.f32 %v1016, %v1121
  %v1146 = vadd.f32 %v1017, %v1123
  %v1147 = vadd.f32 %v1018, %v1125
  %v1148 = vadd.f32 %v1019, %v1127
  %v1149 = vadd.f32 %v1020, %v1129
  %v1150 = vadd.f32 %v1021, %v1131
  %v1151 = vadd.f32 %v1022, %v1133
  %v1152 = vadd.f32 %v1023, %v1135
  %v1153 = vadd.f32 %v1024, %v1137
  %v1154 = vsel %vm913, %v896, 0.0
  %v1155 = vsel %vm914, %v895, 0.0
  %v1156 = vsel %vm915, %v894, 0.0
  %v1157 = vsel %vm916, %v893, 0.0
  %v1158 = vsel %vm917, %v892, 0.0
  %v1159 = vsel %vm918, %v891, 0.0
  %v1160 = vsel %vm919, %v890, 0.0
  %v1161 = vsel %vm920, %v889, 0.0
  %v1162 = vsel %vm921, %v888, 0.0
  %v1163 = vsel %vm922, %v887, 0.0
  %v1164 = vsel %vm923, %v886, 0.0
  %v1165 = vsel %vm924, %v885, 0.0
  %v1166 = vsel %vm925, %v884, 0.0
  %v1167 = vsel %vm926, %v883, 0.0
  %v1168 = vsel %vm927, %v882, 0.0
  %v1169 = vsel %vm928, %v881, 0.0
  %1170 = vrot.lane.b32.xlu0 %v1154, 24
  %v1171 = vpop.permute.xlu0 %1170
  %1172 = vrot.lane.b32.xlu0 %v1155, 24
  %v1173 = vpop.permute.xlu0 %1172
  %1174 = vrot.lane.b32.xlu0 %v1156, 24
  %v1175 = vpop.permute.xlu0 %1174
  %1176 = vrot.lane.b32.xlu0 %v1157, 24
  %v1177 = vpop.permute.xlu0 %1176
  %1178 = vrot.lane.b32.xlu0 %v1158, 24
  %v1179 = vpop.permute.xlu0 %1178
  %1180 = vrot.lane.b32.xlu0 %v1159, 24
  %v1181 = vpop.permute.xlu0 %1180
  %1182 = vrot.lane.b32.xlu0 %v1160, 24
  %v1183 = vpop.permute.xlu0 %1182
  %1184 = vrot.lane.b32.xlu0 %v1161, 24
  %v1185 = vpop.permute.xlu0 %1184
  %1186 = vrot.lane.b32.xlu0 %v1162, 24
  %v1187 = vpop.permute.xlu0 %1186
  %1188 = vrot.lane.b32.xlu0 %v1163, 24
  %v1189 = vpop.permute.xlu0 %1188
  %1190 = vrot.lane.b32.xlu0 %v1164, 24
  %v1191 = vpop.permute.xlu0 %1190
  %1192 = vrot.lane.b32.xlu0 %v1165, 24
  %v1193 = vpop.permute.xlu0 %1192
  %1194 = vrot.lane.b32.xlu0 %v1166, 24
  %v1195 = vpop.permute.xlu0 %1194
  %1196 = vrot.lane.b32.xlu0 %v1167, 24
  %v1197 = vpop.permute.xlu0 %1196
  %1198 = vrot.lane.b32.xlu0 %v1168, 24
  %v1199 = vpop.permute.xlu0 %1198
  %1200 = vrot.lane.b32.xlu0 %v1169, 24
  %v1201 = vpop.permute.xlu0 %1200
  %v1202 = vadd.f32 %v1138, %v1171
  %v1203 = vadd.f32 %v1139, %v1173
  %v1204 = vadd.f32 %v1140, %v1175
  %v1205 = vadd.f32 %v1141, %v1177
  %v1206 = vadd.f32 %v1142, %v1179
  %v1207 = vadd.f32 %v1143, %v1181
  %v1208 = vadd.f32 %v1144, %v1183
  %v1209 = vadd.f32 %v1145, %v1185
  %v1210 = vadd.f32 %v1146, %v1187
  %v1211 = vadd.f32 %v1147, %v1189
  %v1212 = vadd.f32 %v1148, %v1191
  %v1213 = vadd.f32 %v1149, %v1193
  %v1214 = vadd.f32 %v1150, %v1195
  %v1215 = vadd.f32 %v1151, %v1197
  %v1216 = vadd.f32 %v1152, %v1199
  %v1217 = vadd.f32 %v1153, %v1201
  %1218 = vrot.lane.b32.xlu0 %v703, 32
  %v1219 = vpop.permute.xlu0 %1218
  %1220 = vrot.lane.b32.xlu0 %v704, 32
  %v1221 = vpop.permute.xlu0 %1220
  %1222 = vrot.lane.b32.xlu0 %v705, 32
  %v1223 = vpop.permute.xlu0 %1222
  %1224 = vrot.lane.b32.xlu0 %v706, 32
  %v1225 = vpop.permute.xlu0 %1224
  %1226 = vrot.lane.b32.xlu0 %v707, 32
  %v1227 = vpop.permute.xlu0 %1226
  %1228 = vrot.lane.b32.xlu0 %v708, 32
  %v1229 = vpop.permute.xlu0 %1228
  %1230 = vrot.lane.b32.xlu0 %v709, 32
  %v1231 = vpop.permute.xlu0 %1230
  %1232 = vrot.lane.b32.xlu0 %v710, 32
  %v1233 = vpop.permute.xlu0 %1232
  %1234 = vrot.lane.b32.xlu0 %v711, 32
  %v1235 = vpop.permute.xlu0 %1234
  %1236 = vrot.lane.b32.xlu0 %v712, 32
  %v1237 = vpop.permute.xlu0 %1236
  %1238 = vrot.lane.b32.xlu0 %v713, 32
  %v1239 = vpop.permute.xlu0 %1238
  %1240 = vrot.lane.b32.xlu0 %v714, 32
  %v1241 = vpop.permute.xlu0 %1240
  %1242 = vrot.lane.b32.xlu0 %v715, 32
  %v1243 = vpop.permute.xlu0 %1242
  %1244 = vrot.lane.b32.xlu0 %v716, 32
  %v1245 = vpop.permute.xlu0 %1244
  %1246 = vrot.lane.b32.xlu0 %v717, 32
  %v1247 = vpop.permute.xlu0 %1246
  %1248 = vrot.lane.b32.xlu0 %v718, 32
  %v1249 = vpop.permute.xlu0 %1248
  %v1250 = vadd.f32 %v1202, %v1219
  %v1251 = vadd.f32 %v1203, %v1221
  %v1252 = vadd.f32 %v1204, %v1223
  %v1253 = vadd.f32 %v1205, %v1225
  %v1254 = vadd.f32 %v1206, %v1227
  %v1255 = vadd.f32 %v1207, %v1229
  %v1256 = vadd.f32 %v1208, %v1231
  %v1257 = vadd.f32 %v1209, %v1233
  %v1258 = vadd.f32 %v1210, %v1235
  %v1259 = vadd.f32 %v1211, %v1237
  %v1260 = vadd.f32 %v1212, %v1239
  %v1261 = vadd.f32 %v1213, %v1241
  %v1262 = vadd.f32 %v1214, %v1243
  %v1263 = vadd.f32 %v1215, %v1245
  %v1264 = vadd.f32 %v1216, %v1247
  %v1265 = vadd.f32 %v1217, %v1249
  %v1266 = vsel %vm1058, %v1056, 0.0
  %v1267 = vsel %vm1059, %v1055, 0.0
  %v1268 = vsel %vm1060, %v1054, 0.0
  %v1269 = vsel %vm1061, %v1053, 0.0
  %v1270 = vsel %vm1062, %v1052, 0.0
  %v1271 = vsel %vm1063, %v1051, 0.0
  %v1272 = vsel %vm1064, %v1050, 0.0
  %v1273 = vsel %vm1065, %v1049, 0.0
  %v1274 = vsel %vm1066, %v1048, 0.0
  %v1275 = vsel %vm1067, %v1047, 0.0
  %v1276 = vsel %vm1068, %v1046, 0.0
  %v1277 = vsel %vm1069, %v1045, 0.0
  %v1278 = vsel %vm1070, %v1044, 0.0
  %v1279 = vsel %vm1071, %v1043, 0.0
  %v1280 = vsel %vm1072, %v1042, 0.0
  %v1281 = vsel %vm1073, %v1057, 0.0
  %1282 = vrot.lane.b32.xlu0 %v1266, 40
  %v1283 = vpop.permute.xlu0 %1282
  %1284 = vrot.lane.b32.xlu0 %v1267, 40
  %v1285 = vpop.permute.xlu0 %1284
  %1286 = vrot.lane.b32.xlu0 %v1268, 40
  %v1287 = vpop.permute.xlu0 %1286
  %1288 = vrot.lane.b32.xlu0 %v1269, 40
  %v1289 = vpop.permute.xlu0 %1288
  %1290 = vrot.lane.b32.xlu0 %v1270, 40
  %v1291 = vpop.permute.xlu0 %1290
  %1292 = vrot.lane.b32.xlu0 %v1271, 40
  %v1293 = vpop.permute.xlu0 %1292
  %1294 = vrot.lane.b32.xlu0 %v1272, 40
  %v1295 = vpop.permute.xlu0 %1294
  %1296 = vrot.lane.b32.xlu0 %v1273, 40
  %v1297 = vpop.permute.xlu0 %1296
  %1298 = vrot.lane.b32.xlu0 %v1274, 40
  %v1299 = vpop.permute.xlu0 %1298
  %1300 = vrot.lane.b32.xlu0 %v1275, 40
  %v1301 = vpop.permute.xlu0 %1300
  %1302 = vrot.lane.b32.xlu0 %v1276, 40
  %v1303 = vpop.permute.xlu0 %1302
  %1304 = vrot.lane.b32.xlu0 %v1277, 40
  %v1305 = vpop.permute.xlu0 %1304
  %1306 = vrot.lane.b32.xlu0 %v1278, 40
  %v1307 = vpop.permute.xlu0 %1306
  %1308 = vrot.lane.b32.xlu0 %v1279, 40
  %v1309 = vpop.permute.xlu0 %1308
  %1310 = vrot.lane.b32.xlu0 %v1280, 40
  %v1311 = vpop.permute.xlu0 %1310
  %1312 = vrot.lane.b32.xlu0 %v1281, 40
  %v1313 = vpop.permute.xlu0 %1312
  %v1314 = vadd.f32 %v1250, %v1283
  %v1315 = vadd.f32 %v1251, %v1285
  %v1316 = vadd.f32 %v1252, %v1287
  %v1317 = vadd.f32 %v1253, %v1289
  %v1318 = vadd.f32 %v1254, %v1291
  %v1319 = vadd.f32 %v1255, %v1293
  %v1320 = vadd.f32 %v1256, %v1295
  %v1321 = vadd.f32 %v1257, %v1297
  %v1322 = vadd.f32 %v1258, %v1299
  %v1323 = vadd.f32 %v1259, %v1301
  %v1324 = vadd.f32 %v1260, %v1303
  %v1325 = vadd.f32 %v1261, %v1305
  %v1326 = vadd.f32 %v1262, %v1307
  %v1327 = vadd.f32 %v1263, %v1309
  %v1328 = vadd.f32 %v1264, %v1311
  %v1329 = vadd.f32 %v1265, %v1313
  %vm1330 = vcmp.lt.s32.totalorder %v848, 7
  %vm1331 = vcmp.lt.s32.totalorder %v849, 7
  %vm1332 = vcmp.lt.s32.totalorder %v850, 7
  %vm1333 = vcmp.lt.s32.totalorder %v851, 7
  %vm1334 = vcmp.lt.s32.totalorder %v852, 7
  %vm1335 = vcmp.lt.s32.totalorder %v853, 7
  %vm1336 = vcmp.lt.s32.totalorder %v854, 7
  %vm1337 = vcmp.lt.s32.totalorder %v855, 7
  %vm1338 = vcmp.lt.s32.totalorder %v856, 7
  %vm1339 = vcmp.lt.s32.totalorder %v857, 7
  %vm1340 = vcmp.lt.s32.totalorder %v858, 7
  %vm1341 = vcmp.lt.s32.totalorder %v859, 7
  %vm1342 = vcmp.lt.s32.totalorder %v860, 7
  %vm1343 = vcmp.lt.s32.totalorder %v861, 7
  %vm1344 = vcmp.lt.s32.totalorder %v862, 7
  %vm1345 = vcmp.lt.s32.totalorder %v863, 7
  %vm1346 = vmand %vm1330, %vm913
  %vm1347 = vmand %vm1331, %vm914
  %vm1348 = vmand %vm1332, %vm915
  %vm1349 = vmand %vm1333, %vm916
  %vm1350 = vmand %vm1334, %vm917
  %vm1351 = vmand %vm1335, %vm918
  %vm1352 = vmand %vm1336, %vm919
  %vm1353 = vmand %vm1337, %vm920
  %vm1354 = vmand %vm1338, %vm921
  %vm1355 = vmand %vm1339, %vm922
  %vm1356 = vmand %vm1340, %vm923
  %vm1357 = vmand %vm1341, %vm924
  %vm1358 = vmand %vm1342, %vm925
  %vm1359 = vmand %vm1343, %vm926
  %vm1360 = vmand %vm1344, %vm927
  %vm1361 = vmand %vm1345, %vm928
  %v1362 = vsel %vm1346, %v895, 0.0
  %v1363 = vsel %vm1347, %v894, 0.0
  %v1364 = vsel %vm1348, %v893, 0.0
  %v1365 = vsel %vm1349, %v892, 0.0
  %v1366 = vsel %vm1350, %v891, 0.0
  %v1367 = vsel %vm1351, %v890, 0.0
  %v1368 = vsel %vm1352, %v889, 0.0
  %v1369 = vsel %vm1353, %v888, 0.0
  %v1370 = vsel %vm1354, %v887, 0.0
  %v1371 = vsel %vm1355, %v886, 0.0
  %v1372 = vsel %vm1356, %v885, 0.0
  %v1373 = vsel %vm1357, %v884, 0.0
  %v1374 = vsel %vm1358, %v883, 0.0
  %v1375 = vsel %vm1359, %v882, 0.0
  %v1376 = vsel %vm1360, %v881, 0.0
  %v1377 = vsel %vm1361, %v896, 0.0
  %1378 = vrot.lane.b32.xlu0 %v1362, 48
  %v1379 = vpop.permute.xlu0 %1378
  %1380 = vrot.lane.b32.xlu0 %v1363, 48
  %v1381 = vpop.permute.xlu0 %1380
  %1382 = vrot.lane.b32.xlu0 %v1364, 48
  %v1383 = vpop.permute.xlu0 %1382
  %1384 = vrot.lane.b32.xlu0 %v1365, 48
  %v1385 = vpop.permute.xlu0 %1384
  %1386 = vrot.lane.b32.xlu0 %v1366, 48
  %v1387 = vpop.permute.xlu0 %1386
  %1388 = vrot.lane.b32.xlu0 %v1367, 48
  %v1389 = vpop.permute.xlu0 %1388
  %1390 = vrot.lane.b32.xlu0 %v1368, 48
  %v1391 = vpop.permute.xlu0 %1390
  %1392 = vrot.lane.b32.xlu0 %v1369, 48
  %v1393 = vpop.permute.xlu0 %1392
  %1394 = vrot.lane.b32.xlu0 %v1370, 48
  %v1395 = vpop.permute.xlu0 %1394
  %1396 = vrot.lane.b32.xlu0 %v1371, 48
  %v1397 = vpop.permute.xlu0 %1396
  %1398 = vrot.lane.b32.xlu0 %v1372, 48
  %v1399 = vpop.permute.xlu0 %1398
  %1400 = vrot.lane.b32.xlu0 %v1373, 48
  %v1401 = vpop.permute.xlu0 %1400
  %1402 = vrot.lane.b32.xlu0 %v1374, 48
  %v1403 = vpop.permute.xlu0 %1402
  %1404 = vrot.lane.b32.xlu0 %v1375, 48
  %v1405 = vpop.permute.xlu0 %1404
  %1406 = vrot.lane.b32.xlu0 %v1376, 48
  %v1407 = vpop.permute.xlu0 %1406
  %1408 = vrot.lane.b32.xlu0 %v1377, 48
  %v1409 = vpop.permute.xlu0 %1408
  %v1410 = vadd.f32 %v1314, %v1379
  %v1411 = vadd.f32 %v1315, %v1381
  %v1412 = vadd.f32 %v1316, %v1383
  %v1413 = vadd.f32 %v1317, %v1385
  %v1414 = vadd.f32 %v1318, %v1387
  %v1415 = vadd.f32 %v1319, %v1389
  %v1416 = vadd.f32 %v1320, %v1391
  %v1417 = vadd.f32 %v1321, %v1393
  %v1418 = vadd.f32 %v1322, %v1395
  %v1419 = vadd.f32 %v1323, %v1397
  %v1420 = vadd.f32 %v1324, %v1399
  %v1421 = vadd.f32 %v1325, %v1401
  %v1422 = vadd.f32 %v1326, %v1403
  %v1423 = vadd.f32 %v1327, %v1405
  %v1424 = vadd.f32 %v1328, %v1407
  %v1425 = vadd.f32 %v1329, %v1409
  %v1426 = vsel %vm1330, %v704, 0.0
  %v1427 = vsel %vm1331, %v705, 0.0
  %v1428 = vsel %vm1332, %v706, 0.0
  %v1429 = vsel %vm1333, %v707, 0.0
  %v1430 = vsel %vm1334, %v708, 0.0
  %v1431 = vsel %vm1335, %v709, 0.0
  %v1432 = vsel %vm1336, %v710, 0.0
  %v1433 = vsel %vm1337, %v711, 0.0
  %v1434 = vsel %vm1338, %v712, 0.0
  %v1435 = vsel %vm1339, %v713, 0.0
  %v1436 = vsel %vm1340, %v714, 0.0
  %v1437 = vsel %vm1341, %v715, 0.0
  %v1438 = vsel %vm1342, %v716, 0.0
  %v1439 = vsel %vm1343, %v717, 0.0
  %v1440 = vsel %vm1344, %v718, 0.0
  %v1441 = vsel %vm1345, %v703, 0.0
  %1442 = vrot.lane.b32.xlu0 %v1426, 56
  %v1443 = vpop.permute.xlu0 %1442
  %1444 = vrot.lane.b32.xlu0 %v1427, 56
  %v1445 = vpop.permute.xlu0 %1444
  %1446 = vrot.lane.b32.xlu0 %v1428, 56
  %v1447 = vpop.permute.xlu0 %1446
  %1448 = vrot.lane.b32.xlu0 %v1429, 56
  %v1449 = vpop.permute.xlu0 %1448
  %1450 = vrot.lane.b32.xlu0 %v1430, 56
  %v1451 = vpop.permute.xlu0 %1450
  %1452 = vrot.lane.b32.xlu0 %v1431, 56
  %v1453 = vpop.permute.xlu0 %1452
  %1454 = vrot.lane.b32.xlu0 %v1432, 56
  %v1455 = vpop.permute.xlu0 %1454
  %1456 = vrot.lane.b32.xlu0 %v1433, 56
  %v1457 = vpop.permute.xlu0 %1456
  %1458 = vrot.lane.b32.xlu0 %v1434, 56
  %v1459 = vpop.permute.xlu0 %1458
  %1460 = vrot.lane.b32.xlu0 %v1435, 56
  %v1461 = vpop.permute.xlu0 %1460
  %1462 = vrot.lane.b32.xlu0 %v1436, 56
  %v1463 = vpop.permute.xlu0 %1462
  %1464 = vrot.lane.b32.xlu0 %v1437, 56
  %v1465 = vpop.permute.xlu0 %1464
  %1466 = vrot.lane.b32.xlu0 %v1438, 56
  %v1467 = vpop.permute.xlu0 %1466
  %1468 = vrot.lane.b32.xlu0 %v1439, 56
  %v1469 = vpop.permute.xlu0 %1468
  %1470 = vrot.lane.b32.xlu0 %v1440, 56
  %v1471 = vpop.permute.xlu0 %1470
  %1472 = vrot.lane.b32.xlu0 %v1441, 56
  %v1473 = vpop.permute.xlu0 %1472
  %v1474 = vadd.f32 %v1410, %v1443
  %v1475 = vadd.f32 %v1411, %v1445
  %v1476 = vadd.f32 %v1412, %v1447
  %v1477 = vadd.f32 %v1413, %v1449
  %v1478 = vadd.f32 %v1414, %v1451
  %v1479 = vadd.f32 %v1415, %v1453
  %v1480 = vadd.f32 %v1416, %v1455
  %v1481 = vadd.f32 %v1417, %v1457
  %v1482 = vadd.f32 %v1418, %v1459
  %v1483 = vadd.f32 %v1419, %v1461
  %v1484 = vadd.f32 %v1420, %v1463
  %v1485 = vadd.f32 %v1421, %v1465
  %v1486 = vadd.f32 %v1422, %v1467
  %v1487 = vadd.f32 %v1423, %v1469
  %v1488 = vadd.f32 %v1424, %v1471
  %v1489 = vadd.f32 %v1425, %v1473
  %vm1490 = vmand %vm1330, %vm1058
  %vm1491 = vmand %vm1331, %vm1059
  %vm1492 = vmand %vm1332, %vm1060
  %vm1493 = vmand %vm1333, %vm1061
  %vm1494 = vmand %vm1334, %vm1062
  %vm1495 = vmand %vm1335, %vm1063
  %vm1496 = vmand %vm1336, %vm1064
  %vm1497 = vmand %vm1337, %vm1065
  %vm1498 = vmand %vm1338, %vm1066
  %vm1499 = vmand %vm1339, %vm1067
  %vm1500 = vmand %vm1340, %vm1068
  %vm1501 = vmand %vm1341, %vm1069
  %vm1502 = vmand %vm1342, %vm1070
  %vm1503 = vmand %vm1343, %vm1071
  %vm1504 = vmand %vm1344, %vm1072
  %vm1505 = vmand %vm1345, %vm1073
  %v1506 = vsel %vm1490, %v1055, 0.0
  %v1507 = vsel %vm1491, %v1054, 0.0
  %v1508 = vsel %vm1492, %v1053, 0.0
  %v1509 = vsel %vm1493, %v1052, 0.0
  %v1510 = vsel %vm1494, %v1051, 0.0
  %v1511 = vsel %vm1495, %v1050, 0.0
  %v1512 = vsel %vm1496, %v1049, 0.0
  %v1513 = vsel %vm1497, %v1048, 0.0
  %v1514 = vsel %vm1498, %v1047, 0.0
  %v1515 = vsel %vm1499, %v1046, 0.0
  %v1516 = vsel %vm1500, %v1045, 0.0
  %v1517 = vsel %vm1501, %v1044, 0.0
  %v1518 = vsel %vm1502, %v1043, 0.0
  %v1519 = vsel %vm1503, %v1042, 0.0
  %v1520 = vsel %vm1504, %v1057, 0.0
  %v1521 = vsel %vm1505, %v1056, 0.0
  %1522 = vrot.lane.b32.xlu0 %v1506, 64
  %v1523 = vpop.permute.xlu0 %1522
  %1524 = vrot.lane.b32.xlu0 %v1507, 64
  %v1525 = vpop.permute.xlu0 %1524
  %1526 = vrot.lane.b32.xlu0 %v1508, 64
  %v1527 = vpop.permute.xlu0 %1526
  %1528 = vrot.lane.b32.xlu0 %v1509, 64
  %v1529 = vpop.permute.xlu0 %1528
  %1530 = vrot.lane.b32.xlu0 %v1510, 64
  %v1531 = vpop.permute.xlu0 %1530
  %1532 = vrot.lane.b32.xlu0 %v1511, 64
  %v1533 = vpop.permute.xlu0 %1532
  %1534 = vrot.lane.b32.xlu0 %v1512, 64
  %v1535 = vpop.permute.xlu0 %1534
  %1536 = vrot.lane.b32.xlu0 %v1513, 64
  %v1537 = vpop.permute.xlu0 %1536
  %1538 = vrot.lane.b32.xlu0 %v1514, 64
  %v1539 = vpop.permute.xlu0 %1538
  %1540 = vrot.lane.b32.xlu0 %v1515, 64
  %v1541 = vpop.permute.xlu0 %1540
  %1542 = vrot.lane.b32.xlu0 %v1516, 64
  %v1543 = vpop.permute.xlu0 %1542
  %1544 = vrot.lane.b32.xlu0 %v1517, 64
  %v1545 = vpop.permute.xlu0 %1544
  %1546 = vrot.lane.b32.xlu0 %v1518, 64
  %v1547 = vpop.permute.xlu0 %1546
  %1548 = vrot.lane.b32.xlu0 %v1519, 64
  %v1549 = vpop.permute.xlu0 %1548
  %1550 = vrot.lane.b32.xlu0 %v1520, 64
  %v1551 = vpop.permute.xlu0 %1550
  %1552 = vrot.lane.b32.xlu0 %v1521, 64
  %v1553 = vpop.permute.xlu0 %1552
  %v1554 = vadd.f32 %v1474, %v1523
  %v1555 = vadd.f32 %v1475, %v1525
  %v1556 = vadd.f32 %v1476, %v1527
  %v1557 = vadd.f32 %v1477, %v1529
  %v1558 = vadd.f32 %v1478, %v1531
  %v1559 = vadd.f32 %v1479, %v1533
  %v1560 = vadd.f32 %v1480, %v1535
  %v1561 = vadd.f32 %v1481, %v1537
  %v1562 = vadd.f32 %v1482, %v1539
  %v1563 = vadd.f32 %v1483, %v1541
  %v1564 = vadd.f32 %v1484, %v1543
  %v1565 = vadd.f32 %v1485, %v1545
  %v1566 = vadd.f32 %v1486, %v1547
  %v1567 = vadd.f32 %v1487, %v1549
  %v1568 = vadd.f32 %v1488, %v1551
  %v1569 = vadd.f32 %v1489, %v1553
  %v1570 = vpack.c.bf16 %v1555, %v1554
  %v1571 = vpack.c.bf16 %v1557, %v1556
  %v1572 = vpack.c.bf16 %v1559, %v1558
  %v1573 = vpack.c.bf16 %v1561, %v1560
  %v1574 = vpack.c.bf16 %v1563, %v1562
  %v1575 = vpack.c.bf16 %v1565, %v1564
  %v1576 = vpack.c.bf16 %v1567, %v1566
  %v1577 = vpack.c.bf16 %v1569, %v1568
  %v1578 = vld [vmem:[%s3] sm:$0xf]
  %v1579 = vld [vmem:[%s3 + $0x4] sm:$0xf]
  %v1580 = vld [vmem:[%s3 + $0x8] sm:$0xf]
  %v1581 = vld [vmem:[%s3 + $0xc] sm:$0xf]
  %v1582 = vld [vmem:[%s3 + $0x10] sm:$0xf]
  %v1583 = vld [vmem:[%s3 + $0x14] sm:$0xf]
  %v1584 = vld [vmem:[%s3 + $0x18] sm:$0xf]
  %v1585 = vld [vmem:[%s3 + $0x1c] sm:$0xf]
  %v1586 = vld [vmem:[%s3 + $0x20] sm:$0xf]
  %v1587 = vld [vmem:[%s3 + $0x24] sm:$0xf]
  %v1588 = vld [vmem:[%s3 + $0x28] sm:$0xf]
  %v1589 = vld [vmem:[%s3 + $0x2c] sm:$0xf]
  %v1590 = vld [vmem:[%s3 + $0x30] sm:$0xf]
  %v1591 = vld [vmem:[%s3 + $0x34] sm:$0xf]
  %v1592 = vld [vmem:[%s3 + $0x38] sm:$0xf]
  %v1593 = vld [vmem:[%s3 + $0x3c] sm:$0xf]
  %v1594 = vld [vmem:[%s4] sm:$0x1]
  %v1596 = vlaneseq
  %v1597 = vshrl.u32 %v1596, 7
  %v1598 = vsub.s32 0, %v1597
  %v1599 = vrot.slane %v1594, %v1598
  %v1617 = vunpack.c.l.b16 %v1578
  %v1618 = vunpack.c.l.b16 %v1579
  %v1619 = vunpack.c.l.b16 %v1580
  %v1620 = vunpack.c.l.b16 %v1581
  %v1621 = vunpack.c.l.b16 %v1582
  %v1622 = vunpack.c.l.b16 %v1583
  %v1623 = vunpack.c.l.b16 %v1584
  %v1624 = vunpack.c.l.b16 %v1585
  %v1625 = vunpack.c.l.b16 %v1586
  %v1626 = vunpack.c.l.b16 %v1587
  %v1627 = vunpack.c.l.b16 %v1588
  %v1628 = vunpack.c.l.b16 %v1589
  %v1629 = vunpack.c.l.b16 %v1590
  %v1630 = vunpack.c.l.b16 %v1591
  %v1631 = vunpack.c.l.b16 %v1592
  %v1632 = vunpack.c.l.b16 %v1593
  %v1633 = vpack.c.b16 %v1618, %v1617
  %v1634 = vpack.c.b16 %v1620, %v1619
  %v1635 = vpack.c.b16 %v1622, %v1621
  %v1636 = vpack.c.b16 %v1624, %v1623
  %v1637 = vpack.c.b16 %v1626, %v1625
  %v1638 = vpack.c.b16 %v1628, %v1627
  %v1639 = vpack.c.b16 %v1630, %v1629
  %v1640 = vpack.c.b16 %v1632, %v1631
  %1649 = vmatprep.subr.bf16.mxu0 0
  %1650 = vmatpush1.bf16.msra.mxu0 %v1640
  %1651 = vmatprep.subr.bf16.mxu0 0
  %1652 = vmatpush1.bf16.msra.mxu0 %v1639
  %1653 = vmatprep.subr.bf16.mxu0 0
  %1654 = vmatpush1.bf16.msra.mxu0 %v1638
  %1655 = vmatprep.subr.bf16.mxu0 0
  %1656 = vmatpush1.bf16.msra.mxu0 %v1637
  %1657 = vmatprep.subr.bf16.mxu0 0
  %1658 = vmatpush1.bf16.msra.mxu0 %v1636
  %1659 = vmatprep.subr.bf16.mxu0 0
  %1660 = vmatpush1.bf16.msra.mxu0 %v1635
  %1661 = vmatprep.subr.bf16.mxu0 0
  %1662 = vmatpush1.bf16.msra.mxu0 %v1634
  %1663 = vmatprep.subr.bf16.mxu0 0
  %1664 = vmatpush1.bf16.msra.mxu0 %v1633
  %1665 = vmatprep.subr.bf16.mxu0 0
  %1666 = vmatpush2.bf16.msra.mxu0 0
  %1667 = vmatprep.subr.bf16.mxu0 0
  %1668 = vmatpush2.bf16.msra.mxu0 0
  %1669 = vmatprep.subr.bf16.mxu0 0
  %1670 = vmatpush2.bf16.msra.mxu0 0
  %1671 = vmatprep.subr.bf16.mxu0 0
  %1672 = vmatpush2.bf16.msra.mxu0 0
  %1673 = vmatprep.subr.bf16.mxu0 0
  %1674 = vmatpush2.bf16.msra.mxu0 0
  %1675 = vmatprep.subr.bf16.mxu0 0
  %1676 = vmatpush2.bf16.msra.mxu0 0
  %1677 = vmatprep.subr.bf16.mxu0 0
  %1678 = vmatpush2.bf16.msra.mxu0 0
  %1679 = vmatprep.subr.bf16.mxu0 0
  %1680 = vmatpush2.bf16.msra.mxu0 0
  %1681 = vmatprep.mubr.bf16.mxu0 0
  %1682 = vmatmul.mubr.bf16.gmra.mxu0 %v1570
  %v1683 = vpop.f32.mrf.mxu0
  %v1684 = vadd.f32 %v1599, %v1683
  %v1685 = vpop.f32.mrf.mxu0
  %v1686 = vpop.f32.mrf.mxu0
  %v1687 = vadd.f32 %v1599, %v1686
  %v1688 = vpop.f32.mrf.mxu0
  %1689 = vmatprep.mubr.bf16.mxu0 0
  %1690 = vmatmul.mubr.bf16.gmra.mxu0 %v1571
  %v1691 = vpop.f32.mrf.mxu0
  %v1692 = vadd.f32 %v1599, %v1691
  %v1693 = vpop.f32.mrf.mxu0
  %v1694 = vpop.f32.mrf.mxu0
  %v1695 = vadd.f32 %v1599, %v1694
  %v1696 = vpop.f32.mrf.mxu0
  %1697 = vmatprep.mubr.bf16.mxu0 0
  %1698 = vmatmul.mubr.bf16.gmra.mxu0 %v1572
  %v1699 = vpop.f32.mrf.mxu0
  %v1700 = vadd.f32 %v1599, %v1699
  %v1701 = vpop.f32.mrf.mxu0
  %v1702 = vpop.f32.mrf.mxu0
  %v1703 = vadd.f32 %v1599, %v1702
  %v1704 = vpop.f32.mrf.mxu0
  %1705 = vmatprep.mubr.bf16.mxu0 0
  %1706 = vmatmul.mubr.bf16.gmra.mxu0 %v1573
  %v1707 = vpop.f32.mrf.mxu0
  %v1708 = vadd.f32 %v1599, %v1707
  %v1709 = vpop.f32.mrf.mxu0
  %v1710 = vpop.f32.mrf.mxu0
  %v1711 = vadd.f32 %v1599, %v1710
  %v1712 = vpop.f32.mrf.mxu0
  %1713 = vmatprep.mubr.bf16.mxu0 0
  %1714 = vmatmul.mubr.bf16.gmra.mxu0 %v1574
  %v1715 = vpop.f32.mrf.mxu0
  %v1716 = vadd.f32 %v1599, %v1715
  %v1717 = vpop.f32.mrf.mxu0
  %v1718 = vpop.f32.mrf.mxu0
  %v1719 = vadd.f32 %v1599, %v1718
  %v1720 = vpop.f32.mrf.mxu0
  %1721 = vmatprep.mubr.bf16.mxu0 0
  %1722 = vmatmul.mubr.bf16.gmra.mxu0 %v1575
  %v1723 = vpop.f32.mrf.mxu0
  %v1724 = vadd.f32 %v1599, %v1723
  %v1725 = vpop.f32.mrf.mxu0
  %v1726 = vpop.f32.mrf.mxu0
  %v1727 = vadd.f32 %v1599, %v1726
  %v1728 = vpop.f32.mrf.mxu0
  %1729 = vmatprep.mubr.bf16.mxu0 0
  %1730 = vmatmul.mubr.bf16.gmra.mxu0 %v1576
  %v1731 = vpop.f32.mrf.mxu0
  %v1732 = vadd.f32 %v1599, %v1731
  %v1733 = vpop.f32.mrf.mxu0
  %v1734 = vpop.f32.mrf.mxu0
  %v1735 = vadd.f32 %v1599, %v1734
  %v1736 = vpop.f32.mrf.mxu0
  %1737 = vmatprep.mubr.bf16.mxu0 0
  %1738 = vmatmul.mubr.bf16.gmra.mxu0 %v1577
  %v1739 = vpop.f32.mrf.mxu0
  %v1740 = vadd.f32 %v1599, %v1739
  %v1741 = vpop.f32.mrf.mxu0
  %v1742 = vpop.f32.mrf.mxu0
  %v1743 = vadd.f32 %v1599, %v1742
  %v1744 = vpop.f32.mrf.mxu0
  %1745 = vdwg.mxu0
  %v1746 = vmax.f32 %v1684, 0.0
  %v1747 = vmax.f32 %v1687, 0.0
  %v1748 = vmax.f32 %v1692, 0.0
  %v1749 = vmax.f32 %v1695, 0.0
  %v1750 = vmax.f32 %v1700, 0.0
  %v1751 = vmax.f32 %v1703, 0.0
  %v1752 = vmax.f32 %v1708, 0.0
  %v1753 = vmax.f32 %v1711, 0.0
  %v1754 = vmax.f32 %v1716, 0.0
  %v1755 = vmax.f32 %v1719, 0.0
  %v1756 = vmax.f32 %v1724, 0.0
  %v1757 = vmax.f32 %v1727, 0.0
  %v1758 = vmax.f32 %v1732, 0.0
  %v1759 = vmax.f32 %v1735, 0.0
  %v1760 = vmax.f32 %v1740, 0.0
  %v1761 = vmax.f32 %v1743, 0.0
  %v1762 = vrot.slane %v1746, 1
  %v1763 = vrot.slane %v1747, 1
  %v1764 = vrot.slane %v1748, 1
  %v1765 = vrot.slane %v1749, 1
  %v1766 = vrot.slane %v1750, 1
  %v1767 = vrot.slane %v1751, 1
  %v1768 = vrot.slane %v1752, 1
  %v1769 = vrot.slane %v1753, 1
  %v1770 = vrot.slane %v1754, 1
  %v1771 = vrot.slane %v1755, 1
  %v1772 = vrot.slane %v1756, 1
  %v1773 = vrot.slane %v1757, 1
  %v1774 = vrot.slane %v1758, 1
  %v1775 = vrot.slane %v1759, 1
  %v1776 = vrot.slane %v1760, 1
  %v1777 = vrot.slane %v1761, 1
  %v1778 = vsel %vm1041, %v1776, %v1777
  %v1779 = vsel %vm1041, %v1775, %v1776
  %v1780 = vsel %vm1041, %v1774, %v1775
  %v1781 = vsel %vm1041, %v1773, %v1774
  %v1782 = vsel %vm1041, %v1772, %v1773
  %v1783 = vsel %vm1041, %v1771, %v1772
  %v1784 = vsel %vm1041, %v1770, %v1771
  %v1785 = vsel %vm1041, %v1769, %v1770
  %v1786 = vsel %vm1041, %v1768, %v1769
  %v1787 = vsel %vm1041, %v1767, %v1768
  %v1788 = vsel %vm1041, %v1766, %v1767
  %v1789 = vsel %vm1041, %v1765, %v1766
  %v1790 = vsel %vm1041, %v1764, %v1765
  %v1791 = vsel %vm1041, %v1763, %v1764
  %v1792 = vsel %vm1041, %v1762, %v1763
  %v1793 = vsel %vm1041, %v1777, %v1762
  %v1794 = vmax.f32 %v1746, %v1792
  %v1795 = vmax.f32 %v1747, %v1791
  %v1796 = vmax.f32 %v1748, %v1790
  %v1797 = vmax.f32 %v1749, %v1789
  %v1798 = vmax.f32 %v1750, %v1788
  %v1799 = vmax.f32 %v1751, %v1787
  %v1800 = vmax.f32 %v1752, %v1786
  %v1801 = vmax.f32 %v1753, %v1785
  %v1802 = vmax.f32 %v1754, %v1784
  %v1803 = vmax.f32 %v1755, %v1783
  %v1804 = vmax.f32 %v1756, %v1782
  %v1805 = vmax.f32 %v1757, %v1781
  %v1806 = vmax.f32 %v1758, %v1780
  %v1807 = vmax.f32 %v1759, %v1779
  %v1808 = vmax.f32 %v1760, %v1778
  %v1809 = vmax.f32 %v1761, %v1793
  %v1810 = vmax.f32 %v1794, %v1795
  %v1811 = vmax.f32 %v1795, %v1796
  %v1812 = vmax.f32 %v1796, %v1797
  %v1813 = vmax.f32 %v1797, %v1798
  %v1814 = vmax.f32 %v1798, %v1799
  %v1815 = vmax.f32 %v1799, %v1800
  %v1816 = vmax.f32 %v1800, %v1801
  %v1817 = vmax.f32 %v1801, %v1802
  %v1818 = vmax.f32 %v1802, %v1803
  %v1819 = vmax.f32 %v1803, %v1804
  %v1820 = vmax.f32 %v1804, %v1805
  %v1821 = vmax.f32 %v1805, %v1806
  %v1822 = vmax.f32 %v1806, %v1807
  %v1823 = vmax.f32 %v1807, %v1808
  %v1824 = vmax.f32 %v1808, %v1809
  %v1825 = vmax.f32 %v1809, %v1794
  %v1826 = vpack.c.bf16 %v1811, %v1810
  %v1827 = vpack.c.bf16 %v1813, %v1812
  %v1828 = vpack.c.bf16 %v1815, %v1814
  %v1829 = vpack.c.bf16 %v1817, %v1816
  %v1830 = vpack.c.bf16 %v1819, %v1818
  %v1831 = vpack.c.bf16 %v1821, %v1820
  %v1832 = vpack.c.bf16 %v1823, %v1822
  %v1833 = vpack.c.bf16 %v1825, %v1824
  %v1842 = vunpack.c.l.b16 %v1826
  %v1843 = vunpack.c.h.b16 %v1826
  %v1844 = vunpack.c.l.b16 %v1827
  %v1845 = vunpack.c.h.b16 %v1827
  %v1846 = vunpack.c.l.b16 %v1828
  %v1847 = vunpack.c.h.b16 %v1828
  %v1848 = vunpack.c.l.b16 %v1829
  %v1849 = vunpack.c.h.b16 %v1829
  %v1850 = vunpack.c.l.b16 %v1830
  %v1851 = vunpack.c.h.b16 %v1830
  %v1852 = vunpack.c.l.b16 %v1831
  %v1853 = vunpack.c.h.b16 %v1831
  %v1854 = vunpack.c.l.b16 %v1832
  %v1855 = vunpack.c.h.b16 %v1832
  %v1856 = vunpack.c.l.b16 %v1833
  %v1857 = vunpack.c.h.b16 %v1833
  %v1858 = vpack.c.b16 %v1842, %v1842
  %v1859 = vpack.c.b16 %v1843, %v1843
  %v1860 = vpack.c.b16 %v1844, %v1844
  %v1861 = vpack.c.b16 %v1845, %v1845
  %v1862 = vpack.c.b16 %v1846, %v1846
  %v1863 = vpack.c.b16 %v1847, %v1847
  %v1864 = vpack.c.b16 %v1848, %v1848
  %v1865 = vpack.c.b16 %v1849, %v1849
  %v1866 = vpack.c.b16 %v1850, %v1850
  %v1867 = vpack.c.b16 %v1851, %v1851
  %v1868 = vpack.c.b16 %v1852, %v1852
  %v1869 = vpack.c.b16 %v1853, %v1853
  %v1870 = vpack.c.b16 %v1854, %v1854
  %v1871 = vpack.c.b16 %v1855, %v1855
  %v1872 = vpack.c.b16 %v1856, %v1856
  %v1873 = vpack.c.b16 %v1857, %v1857
  %1890 = vst [vmem:[%s6] sm:$0xf] %v1858
  %1891 = vst [vmem:[%s6 + $0x4] sm:$0xf] %v1859
  %1892 = vst [vmem:[%s6 + $0x8] sm:$0xf] %v1860
  %1893 = vst [vmem:[%s6 + $0xc] sm:$0xf] %v1861
  %1894 = vst [vmem:[%s6 + $0x10] sm:$0xf] %v1862
  %1895 = vst [vmem:[%s6 + $0x14] sm:$0xf] %v1863
  %1896 = vst [vmem:[%s6 + $0x18] sm:$0xf] %v1864
  %1897 = vst [vmem:[%s6 + $0x1c] sm:$0xf] %v1865
  %1898 = vst [vmem:[%s6 + $0x20] sm:$0xf] %v1866
  %1899 = vst [vmem:[%s6 + $0x24] sm:$0xf] %v1867
  %1900 = vst [vmem:[%s6 + $0x28] sm:$0xf] %v1868
  %1901 = vst [vmem:[%s6 + $0x2c] sm:$0xf] %v1869
  %1902 = vst [vmem:[%s6 + $0x30] sm:$0xf] %v1870
  %1903 = vst [vmem:[%s6 + $0x34] sm:$0xf] %v1871
  %1904 = vst [vmem:[%s6 + $0x38] sm:$0xf] %v1872
  %1905 = vst [vmem:[%s6 + $0x3c] sm:$0xf] %v1873
  // Predicated region
  $region22: #{_forward_impl.2} parent=0 // pred_check
    _
  $region23: #{_forward_impl.2} parent=0 // pred_check_branch
    %1907 = sbr.rel (0) target = $region25
  $region24: #{_forward_impl.2} parent=0 // pred_region
    _
  $region25: #{_forward_impl.2} parent=0 // pred_fallthru
    _
  // Predicated region
  $region26: #{_forward_impl.2} parent=0 // pred_check
    _
  $region27: #{_forward_impl.2} parent=0 // pred_check_branch
    %1909 = sbr.rel (0) target = $region29
  $region28: #{_forward_impl.2} parent=0 // pred_region
    _
  $region29: #{_forward_impl.2} parent=0 // pred_fallthru
    _
  // Predicated region
  $region30: #{_forward_impl.2} parent=0 // pred_check
    _
  $region31: #{_forward_impl.2} parent=0 // pred_check_branch
    %1911 = sbr.rel (0) target = $region33
  $region32: #{_forward_impl.2} parent=0 // pred_region
    _
  $region33: #{_forward_impl.2} parent=0 // pred_fallthru
    _
  // Predicated region
  $region34: #{_forward_impl.2} parent=0 // pred_check
    _
  $region35: #{_forward_impl.2} parent=0 // pred_check_branch
    %1913 = sbr.rel (0) target = $region37
  $region36: #{_forward_impl.2} parent=0 // pred_region
    _
  $region37: #{_forward_impl.2} parent=0 // pred_fallthru
    _

</llo_original>
